<compile_context>
chip_gen: v7x
topology: tpu7x:2x2x1
jax: 0.10.0
libtpu: 0.0.40
codegen_flags: <defaults>
</compile_context>

<pallas_src>
import jax
import jax.numpy as jnp
from jax import lax
from jax.experimental import pallas as pl
from jax.experimental.pallas import tpu as pltpu


def _make_gru_encoder_kernel(num_layers, T, B, H):
    """Builds the kernel for fixed static sizes (layers/directions unrolled)."""
    # packed weights per (layer, direction): layer 0 -> (wx, wh, b),
    # deeper layers -> (wx_fwd_half, wx_bwd_half, wh, b)
    nw = 2 * 3 + (num_layers - 1) * 2 * 4

    def kernel(*refs):
        lens_ref = refs[0]                         # [B, 1] int32
        x_ref = refs[1]                            # [T, B, E]
        w_list = list(refs[2:2 + nw])
        out_f_ref = refs[2 + nw]                   # [T, B, H] forward output
        out_b_ref = refs[3 + nw]                   # [T, B, H] backward output
        buf_pairs = ((refs[4 + nw], refs[5 + nw]),  # ping-pong inter-layer bufs
                     (refs[6 + nw], refs[7 + nw]))  # each [T, B, H]

        lens = lens_ref[...]                       # [B, 1]

        ptr = 0

        def next_w():
            # Reads the next packed weight ONCE (outside the time loop) so it
            # stays resident as a loop-invariant value.
            nonlocal ptr
            v = w_list[ptr][...]
            ptr += 1
            return v

        for layer in range(num_layers):
            last = layer == num_layers - 1
            dst_pair = (out_f_ref, out_b_ref) if last else buf_pairs[layer % 2]
            src_pair = None if layer == 0 else buf_pairs[(layer - 1) % 2]

            for d in range(2):                     # 0 = forward, 1 = backward
                if layer == 0:
                    wx = next_w()                  # [E, 4H]

                    def x_proj(t, wx=wx):
                        return jnp.dot(x_ref[t], wx,
                                       preferred_element_type=jnp.float32)
                else:
                    wxf, wxb = next_w(), next_w()  # [H, 4H] each (split rows of
                                                   # the [2H, 4H] fused matrix)

                    def x_proj(t, wxf=wxf, wxb=wxb, src_pair=src_pair):
                        return (jnp.dot(src_pair[0][t], wxf,
                                        preferred_element_type=jnp.float32)
                                + jnp.dot(src_pair[1][t], wxb,
                                          preferred_element_type=jnp.float32))

                wh = next_w()                      # [H, 4H]
                b = next_w()                       # [1, 4H]
                dst = dst_pair[d]
                reverse = d == 1

                def step(i, h, x_proj=x_proj, wh=wh, b=b, dst=dst,
                         reverse=reverse):
                    t = (T - 1 - i) if reverse else i
                    # Fused gate pre-activations, one lane-dense [B, 4H] block:
                    #   [0H:1H) r,  [1H:2H) z,  [2H:3H) n (input part),
                    #   [3H:4H) n (hidden part, kept separate for r-gating).
                    g = (x_proj(t)
                         + jnp.dot(h, wh, preferred_element_type=jnp.float32)
                         + b)
                    r = jax.nn.sigmoid(g[:, 0:H])
                    z = jax.nn.sigmoid(g[:, H:2 * H])
                    n = jnp.tanh(g[:, 2 * H:3 * H] + r * g[:, 3 * H:4 * H])
                    h_new = n + z * (h - n)        # == (1 - z) * n + z * h
                    valid = t < lens               # [B, 1] packing mask
                    dst[t] = jnp.where(valid, h_new, 0.0)
                    return jnp.where(valid, h_new, h)

                lax.fori_loop(0, T, step, jnp.zeros((B, H), jnp.float32))

    return kernel


def pack_gru_weights(params, d_out, num_layers):
    """One-time host-side packing of PyTorch-layout GRU weights.

    PyTorch layout per (layer, direction): weight_ih [3H, In], weight_hh [3H, H],
    bias_ih [3H], bias_hh [3H], gate order (r, z, n).

    Packed layout used by the kernel (lane-dense, 4H = 128 columns at H=32):
      wx  [In, 4H] = [W_ir^T | W_iz^T | W_in^T | 0      ]
      wh  [H , 4H] = [W_hr^T | W_hz^T | 0      | W_hn^T ]
      b   [1 , 4H] = [b_ir+b_hr | b_iz+b_hz | b_in | b_hn]
    For layers > 0 the input is the concat of (fwd, bwd) halves of the previous
    layer, so wx is split row-wise into two [H, 4H] blocks (avoids an in-kernel
    lane concat).
    """
    H = d_out
    args = []
    for layer in range(num_layers):
        for d in range(2):
            p = params[(layer, d)]
            w_ih, w_hh = p["w_ih"], p["w_hh"]
            b_ih, b_hh = p["b_ih"], p["b_hh"]
            in_dim = w_ih.shape[1]
            wx = jnp.concatenate(
                [w_ih[0:H].T, w_ih[H:2 * H].T, w_ih[2 * H:3 * H].T,
                 jnp.zeros((in_dim, H), jnp.float32)], axis=1)
            wh = jnp.concatenate(
                [w_hh[0:H].T, w_hh[H:2 * H].T,
                 jnp.zeros((H, H), jnp.float32), w_hh[2 * H:3 * H].T], axis=1)
            b = jnp.concatenate(
                [b_ih[0:H] + b_hh[0:H], b_ih[H:2 * H] + b_hh[H:2 * H],
                 b_ih[2 * H:3 * H], b_hh[2 * H:3 * H]]).reshape(1, 4 * H)
            if layer == 0:
                args += [wx, wh, b]
            else:
                args += [wx[0:H], wx[H:2 * H], wh, b]
    return args


def gru_encoder(sent, sent_lens, packed_weights, d_out, num_layers):
    """sent: [B, T, d_emb] f32, sent_lens: [B] int. Returns [B, T, 2*d_out]
    with zeros at padded positions (pad_packed_sequence semantics)."""
    B, T, E = sent.shape
    H = d_out
    x = jnp.transpose(sent, (1, 0, 2))            # time-major [T, B, E]
    lens = jnp.asarray(sent_lens).reshape(B, 1).astype(jnp.int32)

    kernel = _make_gru_encoder_kernel(num_layers, T, B, H)
    vmem = pl.BlockSpec(memory_space=pltpu.VMEM)

    out_f, out_b = pl.pallas_call(
        kernel,
        out_shape=(jax.ShapeDtypeStruct((T, B, H), jnp.float32),
                   jax.ShapeDtypeStruct((T, B, H), jnp.float32)),
        in_specs=[vmem] * (2 + len(packed_weights)),
        out_specs=(vmem, vmem),
        scratch_shapes=[pltpu.VMEM((T, B, H), jnp.float32)] * 4,
    )(lens, x, *packed_weights)

    out = jnp.concatenate([out_f, out_b], axis=-1)   # [T, B, 2H]
    return jnp.transpose(out, (1, 0, 2))             # [B, T, 2H]


def init_gru_params(key, d_emb, d_out, num_layers):
    """PyTorch nn.GRU default init: U(-1/sqrt(H), 1/sqrt(H)) for all params."""
    H = d_out
    bound = 1.0 / (H ** 0.5)
    params = {}
    for layer in range(num_layers):
        in_dim = d_emb if layer == 0 else 2 * H
        for d in range(2):
            key, k1, k2, k3, k4 = jax.random.split(key, 5)
            params[(layer, d)] = {
                "w_ih": jax.random.uniform(k1, (3 * H, in_dim), jnp.float32, -bound, bound),
                "w_hh": jax.random.uniform(k2, (3 * H, H), jnp.float32, -bound, bound),
                "b_ih": jax.random.uniform(k3, (3 * H,), jnp.float32, -bound, bound),
                "b_hh": jax.random.uniform(k4, (3 * H,), jnp.float32, -bound, bound),
            }
    return params


def gru_encoder_ref(sent, sent_lens, params, d_out, num_layers):
    """Pure-JAX reference mirroring PyTorch nn.GRU (bidirectional, packed, eval)."""
    B, T, _ = sent.shape
    H = d_out
    lens = jnp.asarray(sent_lens).reshape(B, 1)

    def run_dir(x_seq, p, reverse):
        h = jnp.zeros((B, H), jnp.float32)
        outs = [None] * T
        order = range(T - 1, -1, -1) if reverse else range(T)
        for t in order:
            gi = x_seq[t] @ p["w_ih"].T + p["b_ih"]
            gh = h @ p["w_hh"].T + p["b_hh"]
            r = jax.nn.sigmoid(gi[:, 0:H] + gh[:, 0:H])
            z = jax.nn.sigmoid(gi[:, H:2 * H] + gh[:, H:2 * H])
            n = jnp.tanh(gi[:, 2 * H:] + r * gh[:, 2 * H:])
            h_new = (1.0 - z) * n + z * h
            valid = t < lens
            h = jnp.where(valid, h_new, h)
            outs[t] = jnp.where(valid, h_new, 0.0)
        return jnp.stack(outs, axis=0)

    x = jnp.transpose(sent, (1, 0, 2))
    for layer in range(num_layers):
        fwd = run_dir(x, params[(layer, 0)], reverse=False)
        bwd = run_dir(x, params[(layer, 1)], reverse=True)
        x = jnp.concatenate([fwd, bwd], axis=-1)
        # nn.GRU inter-layer dropout(0.3) is identity in eval mode.
    return jnp.transpose(x, (1, 0, 2))


if __name__ == "__main__":
    key = jax.random.PRNGKey(0)
    B, T, D_EMB, D_OUT, NUM_LAYERS = 2, 8, 16, 32, 2

    k_params, k_sent = jax.random.split(key)
    params = init_gru_params(k_params, D_EMB, D_OUT, NUM_LAYERS)
    packed = pack_gru_weights(params, D_OUT, NUM_LAYERS)   # one-time host prep

    sent = jax.random.normal(k_sent, (B, T, D_EMB), dtype=jnp.float32)
    sent_lens = jnp.array([T, 5], dtype=jnp.int32)         # variable lengths

    out = gru_encoder(sent, sent_lens, packed, D_OUT, NUM_LAYERS)
    out = jax.block_until_ready(out)

    ref = gru_encoder_ref(sent, sent_lens, params, D_OUT, NUM_LAYERS)
    assert out.shape == (B, T, 2 * D_OUT)
    assert jnp.allclose(out, ref, atol=1e-4, rtol=1e-4), "mismatch vs reference"
    # padded positions must be exactly zero (pad_packed_sequence semantics)
    assert jnp.all(out[1, 5:, :] == 0.0)

    print("KERNEL_OK")
</pallas_src>

<mosaic_0001>
module attributes {stable_mosaic.version = 11 : i64} {
  func.func @kernel(%arg0: memref<2x1xi32, #tpu.memory_space<vmem>>, %arg1: memref<8x2x16xf32, #tpu.memory_space<vmem>>, %arg2: memref<16x128xf32, #tpu.memory_space<vmem>>, %arg3: memref<32x128xf32, #tpu.memory_space<vmem>>, %arg4: memref<1x128xf32, #tpu.memory_space<vmem>>, %arg5: memref<16x128xf32, #tpu.memory_space<vmem>>, %arg6: memref<32x128xf32, #tpu.memory_space<vmem>>, %arg7: memref<1x128xf32, #tpu.memory_space<vmem>>, %arg8: memref<32x128xf32, #tpu.memory_space<vmem>>, %arg9: memref<32x128xf32, #tpu.memory_space<vmem>>, %arg10: memref<32x128xf32, #tpu.memory_space<vmem>>, %arg11: memref<1x128xf32, #tpu.memory_space<vmem>>, %arg12: memref<32x128xf32, #tpu.memory_space<vmem>>, %arg13: memref<32x128xf32, #tpu.memory_space<vmem>>, %arg14: memref<32x128xf32, #tpu.memory_space<vmem>>, %arg15: memref<1x128xf32, #tpu.memory_space<vmem>>, %arg16: memref<8x2x32xf32, #tpu.memory_space<vmem>>, %arg17: memref<8x2x32xf32, #tpu.memory_space<vmem>>, %arg18: memref<8x2x32xf32, #tpu.memory_space<vmem>>, %arg19: memref<8x2x32xf32, #tpu.memory_space<vmem>>, %arg20: memref<8x2x32xf32, #tpu.memory_space<vmem>>, %arg21: memref<8x2x32xf32, #tpu.memory_space<vmem>>) attributes {dimension_semantics = [], scalar_prefetch = 0 : i64, scratch_operands = 4 : i64, tpu.core_type = #tpu.core_type<tc>} {
    %c0 = arith.constant 0 : index
    %c0_0 = arith.constant 0 : index
    %0 = vector.load %arg0[%c0, %c0_0] : memref<2x1xi32, #tpu.memory_space<vmem>>, vector<2x1xi32>
    %c0_1 = arith.constant 0 : index
    %c0_2 = arith.constant 0 : index
    %1 = vector.load %arg2[%c0_1, %c0_2] : memref<16x128xf32, #tpu.memory_space<vmem>>, vector<16x128xf32>
    %c0_3 = arith.constant 0 : index
    %c0_4 = arith.constant 0 : index
    %2 = vector.load %arg3[%c0_3, %c0_4] : memref<32x128xf32, #tpu.memory_space<vmem>>, vector<32x128xf32>
    %c0_5 = arith.constant 0 : index
    %c0_6 = arith.constant 0 : index
    %3 = vector.load %arg4[%c0_5, %c0_6] : memref<1x128xf32, #tpu.memory_space<vmem>>, vector<1x128xf32>
    %cst = arith.constant 0.000000e+00 : f32
    %4 = vector.broadcast %cst : f32 to vector<2x32xf32>
    %c0_i32 = arith.constant 0 : i32
    %c8_i32 = arith.constant 8 : i32
    %5 = arith.addi %c0_i32, %c8_i32 : i32
    %c1_i32 = arith.constant 1 : i32
    %6 = scf.for %arg22 = %c0_i32 to %5 step %c1_i32 iter_args(%arg23 = %4) -> (vector<2x32xf32>)  : i32 {
      %27 = arith.index_cast %arg22 : i32 to index
      %c0_45 = arith.constant 0 : index
      %c0_46 = arith.constant 0 : index
      %28 = vector.load %arg1[%27, %c0_45, %c0_46] : memref<8x2x16xf32, #tpu.memory_space<vmem>>, vector<1x2x16xf32>
      %29 = vector.shape_cast %28 : vector<1x2x16xf32> to vector<2x16xf32>
      %cst_47 = arith.constant dense<0.000000e+00> : vector<2x128xf32>
      %30 = tpu.matmul %29, %1, %cst_47 {dimension_numbers = #tpu.dot_dimension_numbers<[1], [0], [0], [1], [0, 0, 1, 1], [], []>} : vector<2x16xf32>, vector<16x128xf32>, vector<2x128xf32> -> vector<2x128xf32>
      %cst_48 = arith.constant dense<0.000000e+00> : vector<2x128xf32>
      %31 = tpu.matmul %arg23, %2, %cst_48 {dimension_numbers = #tpu.dot_dimension_numbers<[1], [0], [0], [1], [0, 0, 1, 1], [], []>} : vector<2x32xf32>, vector<32x128xf32>, vector<2x128xf32> -> vector<2x128xf32>
      %32 = arith.addf %30, %31 : vector<2x128xf32>
      %33 = vector.broadcast %3 : vector<1x128xf32> to vector<2x128xf32>
      %34 = arith.addf %32, %33 : vector<2x128xf32>
      %35 = vector.extract_strided_slice %34 {offsets = [0, 0], sizes = [2, 32], strides = [1, 1]} : vector<2x128xf32> to vector<2x32xf32>
      %36 = arith.negf %35 : vector<2x32xf32>
      %37 = math.exp %36 : vector<2x32xf32>
      %cst_49 = arith.constant 1.000000e+00 : f32
      %38 = vector.broadcast %cst_49 : f32 to vector<2x32xf32>
      %39 = arith.addf %38, %37 : vector<2x32xf32>
      %40 = arith.divf %38, %39 : vector<2x32xf32>
      %41 = vector.extract_strided_slice %34 {offsets = [0, 32], sizes = [2, 32], strides = [1, 1]} : vector<2x128xf32> to vector<2x32xf32>
      %42 = arith.negf %41 : vector<2x32xf32>
      %43 = math.exp %42 : vector<2x32xf32>
      %cst_50 = arith.constant 1.000000e+00 : f32
      %44 = vector.broadcast %cst_50 : f32 to vector<2x32xf32>
      %45 = arith.addf %44, %43 : vector<2x32xf32>
      %46 = arith.divf %44, %45 : vector<2x32xf32>
      %47 = vector.extract_strided_slice %34 {offsets = [0, 64], sizes = [2, 32], strides = [1, 1]} : vector<2x128xf32> to vector<2x32xf32>
      %48 = vector.extract_strided_slice %34 {offsets = [0, 96], sizes = [2, 32], strides = [1, 1]} : vector<2x128xf32> to vector<2x32xf32>
      %49 = arith.mulf %40, %48 : vector<2x32xf32>
      %50 = arith.addf %47, %49 : vector<2x32xf32>
      %51 = math.tanh %50 : vector<2x32xf32>
      %52 = arith.subf %arg23, %51 : vector<2x32xf32>
      %53 = arith.mulf %46, %52 : vector<2x32xf32>
      %54 = arith.addf %51, %53 : vector<2x32xf32>
      %55 = vector.broadcast %arg22 : i32 to vector<2x1xi32>
      %56 = arith.cmpi slt, %55, %0 : vector<2x1xi32>
      %cst_51 = arith.constant 0.000000e+00 : f32
      %57 = vector.shape_cast %56 : vector<2x1xi1> to vector<2x1xi1>
      %58 = vector.broadcast %57 : vector<2x1xi1> to vector<2x32xi1>
      %59 = vector.broadcast %cst_51 : f32 to vector<2x32xf32>
      %60 = arith.select %58, %54, %59 : vector<2x32xi1>, vector<2x32xf32>
      %61 = arith.index_cast %arg22 : i32 to index
      %c0_52 = arith.constant 0 : index
      %c0_53 = arith.constant 0 : index
      %62 = vector.load %arg18[%61, %c0_52, %c0_53] : memref<8x2x32xf32, #tpu.memory_space<vmem>>, vector<1x2x32xf32>
      %63 = vector.shape_cast %62 : vector<1x2x32xf32> to vector<2x32xf32>
      %64 = vector.shape_cast %60 : vector<2x32xf32> to vector<1x2x32xf32>
      tpu.vector_store %arg18[%61, %c0_52, %c0_53], %64 {strides = array<i32>} : memref<8x2x32xf32, #tpu.memory_space<vmem>>, vector<1x2x32xf32>,
      %65 = vector.shape_cast %56 : vector<2x1xi1> to vector<2x1xi1>
      %66 = vector.broadcast %65 : vector<2x1xi1> to vector<2x32xi1>
      %67 = arith.select %66, %54, %arg23 : vector<2x32xi1>, vector<2x32xf32>
      scf.yield %67 : vector<2x32xf32>
    }
    %c8_i32_7 = arith.constant 8 : i32
    %c0_8 = arith.constant 0 : index
    %c0_9 = arith.constant 0 : index
    %7 = vector.load %arg5[%c0_8, %c0_9] : memref<16x128xf32, #tpu.memory_space<vmem>>, vector<16x128xf32>
    %c0_10 = arith.constant 0 : index
    %c0_11 = arith.constant 0 : index
    %8 = vector.load %arg6[%c0_10, %c0_11] : memref<32x128xf32, #tpu.memory_space<vmem>>, vector<32x128xf32>
    %c0_12 = arith.constant 0 : index
    %c0_13 = arith.constant 0 : index
    %9 = vector.load %arg7[%c0_12, %c0_13] : memref<1x128xf32, #tpu.memory_space<vmem>>, vector<1x128xf32>
    %cst_14 = arith.constant 0.000000e+00 : f32
    %10 = vector.broadcast %cst_14 : f32 to vector<2x32xf32>
    %c0_i32_15 = arith.constant 0 : i32
    %c8_i32_16 = arith.constant 8 : i32
    %11 = arith.addi %c0_i32_15, %c8_i32_16 : i32
    %c1_i32_17 = arith.constant 1 : i32
    %12 = scf.for %arg22 = %c0_i32_15 to %11 step %c1_i32_17 iter_args(%arg23 = %10) -> (vector<2x32xf32>)  : i32 {
      %c7_i32 = arith.constant 7 : i32
      %27 = arith.subi %c7_i32, %arg22 : i32
      %28 = arith.index_cast %27 : i32 to index
      %c0_45 = arith.constant 0 : index
      %c0_46 = arith.constant 0 : index
      %29 = vector.load %arg1[%28, %c0_45, %c0_46] : memref<8x2x16xf32, #tpu.memory_space<vmem>>, vector<1x2x16xf32>
      %30 = vector.shape_cast %29 : vector<1x2x16xf32> to vector<2x16xf32>
      %cst_47 = arith.constant dense<0.000000e+00> : vector<2x128xf32>
      %31 = tpu.matmul %30, %7, %cst_47 {dimension_numbers = #tpu.dot_dimension_numbers<[1], [0], [0], [1], [0, 0, 1, 1], [], []>} : vector<2x16xf32>, vector<16x128xf32>, vector<2x128xf32> -> vector<2x128xf32>
      %cst_48 = arith.constant dense<0.000000e+00> : vector<2x128xf32>
      %32 = tpu.matmul %arg23, %8, %cst_48 {dimension_numbers = #tpu.dot_dimension_numbers<[1], [0], [0], [1], [0, 0, 1, 1], [], []>} : vector<2x32xf32>, vector<32x128xf32>, vector<2x128xf32> -> vector<2x128xf32>
      %33 = arith.addf %31, %32 : vector<2x128xf32>
      %34 = vector.broadcast %9 : vector<1x128xf32> to vector<2x128xf32>
      %35 = arith.addf %33, %34 : vector<2x128xf32>
      %36 = vector.extract_strided_slice %35 {offsets = [0, 0], sizes = [2, 32], strides = [1, 1]} : vector<2x128xf32> to vector<2x32xf32>
      %37 = arith.negf %36 : vector<2x32xf32>
      %38 = math.exp %37 : vector<2x32xf32>
      %cst_49 = arith.constant 1.000000e+00 : f32
      %39 = vector.broadcast %cst_49 : f32 to vector<2x32xf32>
      %40 = arith.addf %39, %38 : vector<2x32xf32>
      %41 = arith.divf %39, %40 : vector<2x32xf32>
      %42 = vector.extract_strided_slice %35 {offsets = [0, 32], sizes = [2, 32], strides = [1, 1]} : vector<2x128xf32> to vector<2x32xf32>
      %43 = arith.negf %42 : vector<2x32xf32>
      %44 = math.exp %43 : vector<2x32xf32>
      %cst_50 = arith.constant 1.000000e+00 : f32
      %45 = vector.broadcast %cst_50 : f32 to vector<2x32xf32>
      %46 = arith.addf %45, %44 : vector<2x32xf32>
      %47 = arith.divf %45, %46 : vector<2x32xf32>
      %48 = vector.extract_strided_slice %35 {offsets = [0, 64], sizes = [2, 32], strides = [1, 1]} : vector<2x128xf32> to vector<2x32xf32>
      %49 = vector.extract_strided_slice %35 {offsets = [0, 96], sizes = [2, 32], strides = [1, 1]} : vector<2x128xf32> to vector<2x32xf32>
      %50 = arith.mulf %41, %49 : vector<2x32xf32>
      %51 = arith.addf %48, %50 : vector<2x32xf32>
      %52 = math.tanh %51 : vector<2x32xf32>
      %53 = arith.subf %arg23, %52 : vector<2x32xf32>
      %54 = arith.mulf %47, %53 : vector<2x32xf32>
      %55 = arith.addf %52, %54 : vector<2x32xf32>
      %56 = vector.broadcast %27 : i32 to vector<2x1xi32>
      %57 = arith.cmpi slt, %56, %0 : vector<2x1xi32>
      %cst_51 = arith.constant 0.000000e+00 : f32
      %58 = vector.shape_cast %57 : vector<2x1xi1> to vector<2x1xi1>
      %59 = vector.broadcast %58 : vector<2x1xi1> to vector<2x32xi1>
      %60 = vector.broadcast %cst_51 : f32 to vector<2x32xf32>
      %61 = arith.select %59, %55, %60 : vector<2x32xi1>, vector<2x32xf32>
      %62 = arith.index_cast %27 : i32 to index
      %c0_52 = arith.constant 0 : index
      %c0_53 = arith.constant 0 : index
      %63 = vector.load %arg19[%62, %c0_52, %c0_53] : memref<8x2x32xf32, #tpu.memory_space<vmem>>, vector<1x2x32xf32>
      %64 = vector.shape_cast %63 : vector<1x2x32xf32> to vector<2x32xf32>
      %65 = vector.shape_cast %61 : vector<2x32xf32> to vector<1x2x32xf32>
      tpu.vector_store %arg19[%62, %c0_52, %c0_53], %65 {strides = array<i32>} : memref<8x2x32xf32, #tpu.memory_space<vmem>>, vector<1x2x32xf32>,
      %66 = vector.shape_cast %57 : vector<2x1xi1> to vector<2x1xi1>
      %67 = vector.broadcast %66 : vector<2x1xi1> to vector<2x32xi1>
      %68 = arith.select %67, %55, %arg23 : vector<2x32xi1>, vector<2x32xf32>
      scf.yield %68 : vector<2x32xf32>
    }
    %c8_i32_18 = arith.constant 8 : i32
    %c0_19 = arith.constant 0 : index
    %c0_20 = arith.constant 0 : index
    %13 = vector.load %arg8[%c0_19, %c0_20] : memref<32x128xf32, #tpu.memory_space<vmem>>, vector<32x128xf32>
    %c0_21 = arith.constant 0 : index
    %c0_22 = arith.constant 0 : index
    %14 = vector.load %arg9[%c0_21, %c0_22] : memref<32x128xf32, #tpu.memory_space<vmem>>, vector<32x128xf32>
    %c0_23 = arith.constant 0 : index
    %c0_24 = arith.constant 0 : index
    %15 = vector.load %arg10[%c0_23, %c0_24] : memref<32x128xf32, #tpu.memory_space<vmem>>, vector<32x128xf32>
    %c0_25 = arith.constant 0 : index
    %c0_26 = arith.constant 0 : index
    %16 = vector.load %arg11[%c0_25, %c0_26] : memref<1x128xf32, #tpu.memory_space<vmem>>, vector<1x128xf32>
    %cst_27 = arith.constant 0.000000e+00 : f32
    %17 = vector.broadcast %cst_27 : f32 to vector<2x32xf32>
    %c0_i32_28 = arith.constant 0 : i32
    %c8_i32_29 = arith.constant 8 : i32
    %18 = arith.addi %c0_i32_28, %c8_i32_29 : i32
    %c1_i32_30 = arith.constant 1 : i32
    %19 = scf.for %arg22 = %c0_i32_28 to %18 step %c1_i32_30 iter_args(%arg23 = %17) -> (vector<2x32xf32>)  : i32 {
      %27 = arith.index_cast %arg22 : i32 to index
      %c0_45 = arith.constant 0 : index
      %c0_46 = arith.constant 0 : index
      %28 = vector.load %arg18[%27, %c0_45, %c0_46] : memref<8x2x32xf32, #tpu.memory_space<vmem>>, vector<1x2x32xf32>
      %29 = vector.shape_cast %28 : vector<1x2x32xf32> to vector<2x32xf32>
      %cst_47 = arith.constant dense<0.000000e+00> : vector<2x128xf32>
      %30 = tpu.matmul %29, %13, %cst_47 {dimension_numbers = #tpu.dot_dimension_numbers<[1], [0], [0], [1], [0, 0, 1, 1], [], []>} : vector<2x32xf32>, vector<32x128xf32>, vector<2x128xf32> -> vector<2x128xf32>
      %31 = arith.index_cast %arg22 : i32 to index
      %c0_48 = arith.constant 0 : index
      %c0_49 = arith.constant 0 : index
      %32 = vector.load %arg19[%31, %c0_48, %c0_49] : memref<8x2x32xf32, #tpu.memory_space<vmem>>, vector<1x2x32xf32>
      %33 = vector.shape_cast %32 : vector<1x2x32xf32> to vector<2x32xf32>
      %cst_50 = arith.constant dense<0.000000e+00> : vector<2x128xf32>
      %34 = tpu.matmul %33, %14, %cst_50 {dimension_numbers = #tpu.dot_dimension_numbers<[1], [0], [0], [1], [0, 0, 1, 1], [], []>} : vector<2x32xf32>, vector<32x128xf32>, vector<2x128xf32> -> vector<2x128xf32>
      %35 = arith.addf %30, %34 : vector<2x128xf32>
      %cst_51 = arith.constant dense<0.000000e+00> : vector<2x128xf32>
      %36 = tpu.matmul %arg23, %15, %cst_51 {dimension_numbers = #tpu.dot_dimension_numbers<[1], [0], [0], [1], [0, 0, 1, 1], [], []>} : vector<2x32xf32>, vector<32x128xf32>, vector<2x128xf32> -> vector<2x128xf32>
      %37 = arith.addf %35, %36 : vector<2x128xf32>
      %38 = vector.broadcast %16 : vector<1x128xf32> to vector<2x128xf32>
      %39 = arith.addf %37, %38 : vector<2x128xf32>
      %40 = vector.extract_strided_slice %39 {offsets = [0, 0], sizes = [2, 32], strides = [1, 1]} : vector<2x128xf32> to vector<2x32xf32>
      %41 = arith.negf %40 : vector<2x32xf32>
      %42 = math.exp %41 : vector<2x32xf32>
      %cst_52 = arith.constant 1.000000e+00 : f32
      %43 = vector.broadcast %cst_52 : f32 to vector<2x32xf32>
      %44 = arith.addf %43, %42 : vector<2x32xf32>
      %45 = arith.divf %43, %44 : vector<2x32xf32>
      %46 = vector.extract_strided_slice %39 {offsets = [0, 32], sizes = [2, 32], strides = [1, 1]} : vector<2x128xf32> to vector<2x32xf32>
      %47 = arith.negf %46 : vector<2x32xf32>
      %48 = math.exp %47 : vector<2x32xf32>
      %cst_53 = arith.constant 1.000000e+00 : f32
      %49 = vector.broadcast %cst_53 : f32 to vector<2x32xf32>
      %50 = arith.addf %49, %48 : vector<2x32xf32>
      %51 = arith.divf %49, %50 : vector<2x32xf32>
      %52 = vector.extract_strided_slice %39 {offsets = [0, 64], sizes = [2, 32], strides = [1, 1]} : vector<2x128xf32> to vector<2x32xf32>
      %53 = vector.extract_strided_slice %39 {offsets = [0, 96], sizes = [2, 32], strides = [1, 1]} : vector<2x128xf32> to vector<2x32xf32>
      %54 = arith.mulf %45, %53 : vector<2x32xf32>
      %55 = arith.addf %52, %54 : vector<2x32xf32>
      %56 = math.tanh %55 : vector<2x32xf32>
      %57 = arith.subf %arg23, %56 : vector<2x32xf32>
      %58 = arith.mulf %51, %57 : vector<2x32xf32>
      %59 = arith.addf %56, %58 : vector<2x32xf32>
      %60 = vector.broadcast %arg22 : i32 to vector<2x1xi32>
      %61 = arith.cmpi slt, %60, %0 : vector<2x1xi32>
      %cst_54 = arith.constant 0.000000e+00 : f32
      %62 = vector.shape_cast %61 : vector<2x1xi1> to vector<2x1xi1>
      %63 = vector.broadcast %62 : vector<2x1xi1> to vector<2x32xi1>
      %64 = vector.broadcast %cst_54 : f32 to vector<2x32xf32>
      %65 = arith.select %63, %59, %64 : vector<2x32xi1>, vector<2x32xf32>
      %66 = arith.index_cast %arg22 : i32 to index
      %c0_55 = arith.constant 0 : index
      %c0_56 = arith.constant 0 : index
      %67 = vector.load %arg16[%66, %c0_55, %c0_56] : memref<8x2x32xf32, #tpu.memory_space<vmem>>, vector<1x2x32xf32>
      %68 = vector.shape_cast %67 : vector<1x2x32xf32> to vector<2x32xf32>
      %69 = vector.shape_cast %65 : vector<2x32xf32> to vector<1x2x32xf32>
      tpu.vector_store %arg16[%66, %c0_55, %c0_56], %69 {strides = array<i32>} : memref<8x2x32xf32, #tpu.memory_space<vmem>>, vector<1x2x32xf32>,
      %70 = vector.shape_cast %61 : vector<2x1xi1> to vector<2x1xi1>
      %71 = vector.broadcast %70 : vector<2x1xi1> to vector<2x32xi1>
      %72 = arith.select %71, %59, %arg23 : vector<2x32xi1>, vector<2x32xf32>
      scf.yield %72 : vector<2x32xf32>
    }
    %c8_i32_31 = arith.constant 8 : i32
    %c0_32 = arith.constant 0 : index
    %c0_33 = arith.constant 0 : index
    %20 = vector.load %arg12[%c0_32, %c0_33] : memref<32x128xf32, #tpu.memory_space<vmem>>, vector<32x128xf32>
    %c0_34 = arith.constant 0 : index
    %c0_35 = arith.constant 0 : index
    %21 = vector.load %arg13[%c0_34, %c0_35] : memref<32x128xf32, #tpu.memory_space<vmem>>, vector<32x128xf32>
    %c0_36 = arith.constant 0 : index
    %c0_37 = arith.constant 0 : index
    %22 = vector.load %arg14[%c0_36, %c0_37] : memref<32x128xf32, #tpu.memory_space<vmem>>, vector<32x128xf32>
    %c0_38 = arith.constant 0 : index
    %c0_39 = arith.constant 0 : index
    %23 = vector.load %arg15[%c0_38, %c0_39] : memref<1x128xf32, #tpu.memory_space<vmem>>, vector<1x128xf32>
    %cst_40 = arith.constant 0.000000e+00 : f32
    %24 = vector.broadcast %cst_40 : f32 to vector<2x32xf32>
    %c0_i32_41 = arith.constant 0 : i32
    %c8_i32_42 = arith.constant 8 : i32
    %25 = arith.addi %c0_i32_41, %c8_i32_42 : i32
    %c1_i32_43 = arith.constant 1 : i32
    %26 = scf.for %arg22 = %c0_i32_41 to %25 step %c1_i32_43 iter_args(%arg23 = %24) -> (vector<2x32xf32>)  : i32 {
      %c7_i32 = arith.constant 7 : i32
      %27 = arith.subi %c7_i32, %arg22 : i32
      %28 = arith.index_cast %27 : i32 to index
      %c0_45 = arith.constant 0 : index
      %c0_46 = arith.constant 0 : index
      %29 = vector.load %arg18[%28, %c0_45, %c0_46] : memref<8x2x32xf32, #tpu.memory_space<vmem>>, vector<1x2x32xf32>
      %30 = vector.shape_cast %29 : vector<1x2x32xf32> to vector<2x32xf32>
      %cst_47 = arith.constant dense<0.000000e+00> : vector<2x128xf32>
      %31 = tpu.matmul %30, %20, %cst_47 {dimension_numbers = #tpu.dot_dimension_numbers<[1], [0], [0], [1], [0, 0, 1, 1], [], []>} : vector<2x32xf32>, vector<32x128xf32>, vector<2x128xf32> -> vector<2x128xf32>
      %32 = arith.index_cast %27 : i32 to index
      %c0_48 = arith.constant 0 : index
      %c0_49 = arith.constant 0 : index
      %33 = vector.load %arg19[%32, %c0_48, %c0_49] : memref<8x2x32xf32, #tpu.memory_space<vmem>>, vector<1x2x32xf32>
      %34 = vector.shape_cast %33 : vector<1x2x32xf32> to vector<2x32xf32>
      %cst_50 = arith.constant dense<0.000000e+00> : vector<2x128xf32>
      %35 = tpu.matmul %34, %21, %cst_50 {dimension_numbers = #tpu.dot_dimension_numbers<[1], [0], [0], [1], [0, 0, 1, 1], [], []>} : vector<2x32xf32>, vector<32x128xf32>, vector<2x128xf32> -> vector<2x128xf32>
      %36 = arith.addf %31, %35 : vector<2x128xf32>
      %cst_51 = arith.constant dense<0.000000e+00> : vector<2x128xf32>
      %37 = tpu.matmul %arg23, %22, %cst_51 {dimension_numbers = #tpu.dot_dimension_numbers<[1], [0], [0], [1], [0, 0, 1, 1], [], []>} : vector<2x32xf32>, vector<32x128xf32>, vector<2x128xf32> -> vector<2x128xf32>
      %38 = arith.addf %36, %37 : vector<2x128xf32>
      %39 = vector.broadcast %23 : vector<1x128xf32> to vector<2x128xf32>
      %40 = arith.addf %38, %39 : vector<2x128xf32>
      %41 = vector.extract_strided_slice %40 {offsets = [0, 0], sizes = [2, 32], strides = [1, 1]} : vector<2x128xf32> to vector<2x32xf32>
      %42 = arith.negf %41 : vector<2x32xf32>
      %43 = math.exp %42 : vector<2x32xf32>
      %cst_52 = arith.constant 1.000000e+00 : f32
      %44 = vector.broadcast %cst_52 : f32 to vector<2x32xf32>
      %45 = arith.addf %44, %43 : vector<2x32xf32>
      %46 = arith.divf %44, %45 : vector<2x32xf32>
      %47 = vector.extract_strided_slice %40 {offsets = [0, 32], sizes = [2, 32], strides = [1, 1]} : vector<2x128xf32> to vector<2x32xf32>
      %48 = arith.negf %47 : vector<2x32xf32>
      %49 = math.exp %48 : vector<2x32xf32>
      %cst_53 = arith.constant 1.000000e+00 : f32
      %50 = vector.broadcast %cst_53 : f32 to vector<2x32xf32>
      %51 = arith.addf %50, %49 : vector<2x32xf32>
      %52 = arith.divf %50, %51 : vector<2x32xf32>
      %53 = vector.extract_strided_slice %40 {offsets = [0, 64], sizes = [2, 32], strides = [1, 1]} : vector<2x128xf32> to vector<2x32xf32>
      %54 = vector.extract_strided_slice %40 {offsets = [0, 96], sizes = [2, 32], strides = [1, 1]} : vector<2x128xf32> to vector<2x32xf32>
      %55 = arith.mulf %46, %54 : vector<2x32xf32>
      %56 = arith.addf %53, %55 : vector<2x32xf32>
      %57 = math.tanh %56 : vector<2x32xf32>
      %58 = arith.subf %arg23, %57 : vector<2x32xf32>
      %59 = arith.mulf %52, %58 : vector<2x32xf32>
      %60 = arith.addf %57, %59 : vector<2x32xf32>
      %61 = vector.broadcast %27 : i32 to vector<2x1xi32>
      %62 = arith.cmpi slt, %61, %0 : vector<2x1xi32>
      %cst_54 = arith.constant 0.000000e+00 : f32
      %63 = vector.shape_cast %62 : vector<2x1xi1> to vector<2x1xi1>
      %64 = vector.broadcast %63 : vector<2x1xi1> to vector<2x32xi1>
      %65 = vector.broadcast %cst_54 : f32 to vector<2x32xf32>
      %66 = arith.select %64, %60, %65 : vector<2x32xi1>, vector<2x32xf32>
      %67 = arith.index_cast %27 : i32 to index
      %c0_55 = arith.constant 0 : index
      %c0_56 = arith.constant 0 : index
      %68 = vector.load %arg17[%67, %c0_55, %c0_56] : memref<8x2x32xf32, #tpu.memory_space<vmem>>, vector<1x2x32xf32>
      %69 = vector.shape_cast %68 : vector<1x2x32xf32> to vector<2x32xf32>
      %70 = vector.shape_cast %66 : vector<2x32xf32> to vector<1x2x32xf32>
      tpu.vector_store %arg17[%67, %c0_55, %c0_56], %70 {strides = array<i32>} : memref<8x2x32xf32, #tpu.memory_space<vmem>>, vector<1x2x32xf32>,
      %71 = vector.shape_cast %62 : vector<2x1xi1> to vector<2x1xi1>
      %72 = vector.broadcast %71 : vector<2x1xi1> to vector<2x32xi1>
      %73 = arith.select %72, %60, %arg23 : vector<2x32xi1>, vector<2x32xf32>
      scf.yield %73 : vector<2x32xf32>
    }
    %c8_i32_44 = arith.constant 8 : i32
    return
  }
}

</mosaic_0001>

<llo_original>
// kernel: tpu_custom_call.1
$region0: #{tpu_custom_call.1}
  #allocation0 [shape = 'u32[]', space=smem, size = 0x4, offset = 0x4, fixed_abs, tag = 'smem constant byte address 0x4 - core index']
  #allocation1 [shape = 'u32[144,128]{1,0:T(1,128)}', space=vmem, size = 0x12000, scoped, tag = 'internal scratch']
  #allocation2 [shape = 'f32[8,2,32]{2,1,0:T(2,128)}', space=vmem, size = 0x2000, scoped, tag = 'scratch operand']
  #allocation3 [shape = 'f32[8,2,32]{2,1,0:T(2,128)}', space=vmem, size = 0x2000, scoped, tag = 'scratch operand']
  #allocation4 [shape = 'f32[8,2,32]{2,1,0:T(2,128)}', space=vmem, size = 0x2000, scoped, tag = 'scratch operand']
  #allocation5 [shape = 'f32[8,2,32]{2,1,0:T(2,128)}', space=vmem, size = 0x2000, scoped, tag = 'scratch operand']
  %s0 = inlined_call_operand.vmem [shape: s32[2,1], index: 0, kind: input, shape index: {}]
  %s1 = inlined_call_operand.hbm [shape: f32[8,2,16], index: 1, kind: input, shape index: {}]
  %s2 = inlined_call_operand.hbm [shape: f32[16,128], index: 2, kind: input, shape index: {}]
  %s3 = inlined_call_operand.hbm [shape: f32[32,128], index: 3, kind: input, shape index: {}]
  %s4 = inlined_call_operand.vmem [shape: f32[1,128], index: 4, kind: input, shape index: {}]
  %s5 = inlined_call_operand.hbm [shape: f32[16,128], index: 5, kind: input, shape index: {}]
  %s6 = inlined_call_operand.hbm [shape: f32[32,128], index: 6, kind: input, shape index: {}]
  %s7 = inlined_call_operand.vmem [shape: f32[1,128], index: 7, kind: input, shape index: {}]
  %s8 = inlined_call_operand.vmem [shape: f32[32,128], index: 8, kind: input, shape index: {}]
  %s9 = inlined_call_operand.hbm [shape: f32[32,128], index: 9, kind: input, shape index: {}]
  %s10 = inlined_call_operand.hbm [shape: f32[32,128], index: 10, kind: input, shape index: {}]
  %s11 = inlined_call_operand.vmem [shape: f32[1,128], index: 11, kind: input, shape index: {}]
  %s12 = inlined_call_operand.hbm [shape: f32[32,128], index: 12, kind: input, shape index: {}]
  %s13 = inlined_call_operand.hbm [shape: f32[32,128], index: 13, kind: input, shape index: {}]
  %s14 = inlined_call_operand.hbm [shape: f32[32,128], index: 14, kind: input, shape index: {}]
  %s15 = inlined_call_operand.vmem [shape: f32[1,128], index: 15, kind: input, shape index: {}]
  %s16 = inlined_call_operand.hbm [shape: f32[8,2,32], index: 16, kind: output, shape index: {0}]
  %s17 = inlined_call_operand.hbm [shape: f32[8,2,32], index: 17, kind: output, shape index: {1}]
  %18 = xla_tuple %s16, %s17
  %s19 = sld [smem:[#allocation0]]
  $region150: #{tpu_custom_call.1} parent=0
    _
  %s21 = ssub.s32 1, %s19
  %s22 = scalar_select 0, %s21, %s19
  $region1: #{tpu_custom_call.1} parent=0
    #allocation6 [shape = 'u8[8192]{0}', space=vmem, size = 0x2000, scoped, tag = 'input window, operand 1, single buffered']
    #allocation7 [shape = 's32[1]{0}', space=sflag, size = 0x4, scoped, tag = 'scoped memory for tpu_custom_call.1']
    #allocation8 [shape = 's32[1]{0}', space=sflag, size = 0x4, scoped, tag = 'scoped memory for tpu_custom_call.1']
    #allocation9 [shape = 'u8[8192]{0}', space=vmem, size = 0x2000, scoped, tag = 'input window, operand 2, single buffered']
    #allocation10 [shape = 's32[1]{0}', space=sflag, size = 0x4, scoped, tag = 'scoped memory for tpu_custom_call.1']
    #allocation11 [shape = 'u8[16384]{0}', space=vmem, size = 0x4000, scoped, tag = 'input window, operand 3, single buffered']
    #allocation12 [shape = 'u8[8192]{0}', space=vmem, size = 0x2000, scoped, tag = 'input window, operand 5, single buffered']
    #allocation13 [shape = 's32[1]{0}', space=sflag, size = 0x4, scoped, tag = 'scoped memory for tpu_custom_call.1']
    #allocation14 [shape = 'u8[16384]{0}', space=vmem, size = 0x4000, scoped, tag = 'input window, operand 6, single buffered']
    #allocation15 [shape = 'u8[16384]{0}', space=vmem, size = 0x4000, scoped, tag = 'input window, operand 9, single buffered']
    #allocation16 [shape = 's32[1]{0}', space=sflag, size = 0x4, scoped, tag = 'scoped memory for tpu_custom_call.1']
    #allocation17 [shape = 'u8[16384]{0}', space=vmem, size = 0x4000, scoped, tag = 'input window, operand 10, single buffered']
    #allocation18 [shape = 'u8[16384]{0}', space=vmem, size = 0x4000, scoped, tag = 'input window, operand 12, single buffered']
    #allocation19 [shape = 's32[1]{0}', space=sflag, size = 0x4, scoped, tag = 'scoped memory for tpu_custom_call.1']
    #allocation20 [shape = 'u8[16384]{0}', space=vmem, size = 0x4000, scoped, tag = 'input window, operand 13, single buffered']
    #allocation21 [shape = 'u8[16384]{0}', space=vmem, size = 0x4000, scoped, tag = 'input window, operand 14, single buffered']
    #allocation22 [shape = 's32[1]{0}', space=sflag, size = 0x4, scoped, tag = 'scoped memory for tpu_custom_call.1']
    #allocation23 [shape = 'u8[8192]{0}', space=vmem, size = 0x2000, scoped, tag = 'output window, operand 0, single buffered']
    #allocation24 [shape = 'u8[8192]{0}', space=vmem, size = 0x2000, scoped, tag = 'output window, operand 1, single buffered']
    #allocation25 [shape = 's32[1]{0}', space=sflag, size = 0x4, scoped, tag = 'scoped memory for tpu_custom_call.1']
    %23 = vsyncpa [#allocation7], 0
    %24 = vsyncpa [#allocation10], 0
    %25 = vsyncpa [#allocation13], 0
    %26 = vsyncpa [#allocation16], 0
    %27 = vsyncpa [#allocation19], 0
    %28 = vsyncpa [#allocation22], 0
    %29 = vsyncpa [#allocation8], 0
    %30 = vsyncpa [#allocation25], 0
    // Predicated region
    $region2: #{tpu_custom_call.1} parent=1 // pred_check
      _
    $region3: #{tpu_custom_call.1} parent=1 // pred_check_branch
      %32 = sbr.rel (0) target = $region5
    $region4: #{tpu_custom_call.1} parent=1 // pred_region
      _
    $region5: #{tpu_custom_call.1} parent=1 // pred_fallthru
      _
    // Predicated region
    $region6: #{tpu_custom_call.1} parent=1 // pred_check
      _
    $region7: #{tpu_custom_call.1} parent=1 // pred_check_branch
      %34 = sbr.rel (0) target = $region9
    $region8: #{tpu_custom_call.1} parent=1 // pred_region
      %s36 = ssub.s32 256, 256
      %37 = vsyncadd [#allocation7], %s36
      %s38 = sshll.u32 [#allocation6], 4
      %s39 = int_to_ptr.vmem [resolvable:$true] %s38
      %44 = dma.hbm_to_vmem [thread:$0]  %s1, 256, %s39, [#allocation7], 32, 32, 2
    $region9: #{tpu_custom_call.1} parent=1 // pred_fallthru
      _
    // Predicated region
    $region10: #{tpu_custom_call.1} parent=1 // pred_check
      _
    $region11: #{tpu_custom_call.1} parent=1 // pred_check_branch
      %46 = sbr.rel (0) target = $region13
    $region12: #{tpu_custom_call.1} parent=1 // pred_region
      %s48 = ssub.s32 256, 256
      %49 = vsyncadd [#allocation10], %s48
      %s50 = sshll.u32 [#allocation9], 4
      %s51 = int_to_ptr.vmem [resolvable:$true] %s50
      %56 = dma.hbm_to_vmem [thread:$0]  %s2, 256, %s51, [#allocation10], 128, 128, 8
    $region13: #{tpu_custom_call.1} parent=1 // pred_fallthru
      _
    // Predicated region
    $region14: #{tpu_custom_call.1} parent=1 // pred_check
      _
    $region15: #{tpu_custom_call.1} parent=1 // pred_check_branch
      %58 = sbr.rel (0) target = $region17
    $region16: #{tpu_custom_call.1} parent=1 // pred_region
      %s60 = ssub.s32 512, 512
      %61 = vsyncadd [#allocation10], %s60
      %s62 = sshll.u32 [#allocation11], 4
      %s63 = int_to_ptr.vmem [resolvable:$true] %s62
      %68 = dma.hbm_to_vmem [thread:$0]  %s3, 512, %s63, [#allocation10], 128, 128, 8
    $region17: #{tpu_custom_call.1} parent=1 // pred_fallthru
      _
    // Predicated region
    $region18: #{tpu_custom_call.1} parent=1 // pred_check
      _
    $region19: #{tpu_custom_call.1} parent=1 // pred_check_branch
      %70 = sbr.rel (0) target = $region21
    $region20: #{tpu_custom_call.1} parent=1 // pred_region
      _
    $region21: #{tpu_custom_call.1} parent=1 // pred_fallthru
      _
    // Predicated region
    $region22: #{tpu_custom_call.1} parent=1 // pred_check
      _
    $region23: #{tpu_custom_call.1} parent=1 // pred_check_branch
      %72 = sbr.rel (0) target = $region25
    $region24: #{tpu_custom_call.1} parent=1 // pred_region
      %s74 = ssub.s32 256, 256
      %75 = vsyncadd [#allocation13], %s74
      %s76 = sshll.u32 [#allocation12], 4
      %s77 = int_to_ptr.vmem [resolvable:$true] %s76
      %82 = dma.hbm_to_vmem [thread:$0]  %s5, 256, %s77, [#allocation13], 128, 128, 8
    $region25: #{tpu_custom_call.1} parent=1 // pred_fallthru
      _
    // Predicated region
    $region26: #{tpu_custom_call.1} parent=1 // pred_check
      _
    $region27: #{tpu_custom_call.1} parent=1 // pred_check_branch
      %84 = sbr.rel (0) target = $region29
    $region28: #{tpu_custom_call.1} parent=1 // pred_region
      %s86 = ssub.s32 512, 512
      %87 = vsyncadd [#allocation13], %s86
      %s88 = sshll.u32 [#allocation14], 4
      %s89 = int_to_ptr.vmem [resolvable:$true] %s88
      %94 = dma.hbm_to_vmem [thread:$0]  %s6, 512, %s89, [#allocation13], 128, 128, 8
    $region29: #{tpu_custom_call.1} parent=1 // pred_fallthru
      _
    // Predicated region
    $region30: #{tpu_custom_call.1} parent=1 // pred_check
      _
    $region31: #{tpu_custom_call.1} parent=1 // pred_check_branch
      %96 = sbr.rel (0) target = $region33
    $region32: #{tpu_custom_call.1} parent=1 // pred_region
      _
    $region33: #{tpu_custom_call.1} parent=1 // pred_fallthru
      _
    // Predicated region
    $region34: #{tpu_custom_call.1} parent=1 // pred_check
      _
    $region35: #{tpu_custom_call.1} parent=1 // pred_check_branch
      %98 = sbr.rel (0) target = $region37
    $region36: #{tpu_custom_call.1} parent=1 // pred_region
      _
    $region37: #{tpu_custom_call.1} parent=1 // pred_fallthru
      _
    // Predicated region
    $region38: #{tpu_custom_call.1} parent=1 // pred_check
      _
    $region39: #{tpu_custom_call.1} parent=1 // pred_check_branch
      %100 = sbr.rel (0) target = $region41
    $region40: #{tpu_custom_call.1} parent=1 // pred_region
      %s102 = ssub.s32 512, 512
      %103 = vsyncadd [#allocation16], %s102
      %s104 = sshll.u32 [#allocation15], 4
      %s105 = int_to_ptr.vmem [resolvable:$true] %s104
      %110 = dma.hbm_to_vmem [thread:$0]  %s9, 512, %s105, [#allocation16], 128, 128, 8
    $region41: #{tpu_custom_call.1} parent=1 // pred_fallthru
      _
    // Predicated region
    $region42: #{tpu_custom_call.1} parent=1 // pred_check
      _
    $region43: #{tpu_custom_call.1} parent=1 // pred_check_branch
      %112 = sbr.rel (0) target = $region45
    $region44: #{tpu_custom_call.1} parent=1 // pred_region
      %s114 = ssub.s32 512, 512
      %115 = vsyncadd [#allocation16], %s114
      %s116 = sshll.u32 [#allocation17], 4
      %s117 = int_to_ptr.vmem [resolvable:$true] %s116
      %122 = dma.hbm_to_vmem [thread:$0]  %s10, 512, %s117, [#allocation16], 128, 128, 8
    $region45: #{tpu_custom_call.1} parent=1 // pred_fallthru
      _
    // Predicated region
    $region46: #{tpu_custom_call.1} parent=1 // pred_check
      _
    $region47: #{tpu_custom_call.1} parent=1 // pred_check_branch
      %124 = sbr.rel (0) target = $region49
    $region48: #{tpu_custom_call.1} parent=1 // pred_region
      _
    $region49: #{tpu_custom_call.1} parent=1 // pred_fallthru
      _
    // Predicated region
    $region50: #{tpu_custom_call.1} parent=1 // pred_check
      _
    $region51: #{tpu_custom_call.1} parent=1 // pred_check_branch
      %126 = sbr.rel (0) target = $region53
    $region52: #{tpu_custom_call.1} parent=1 // pred_region
      %s128 = ssub.s32 512, 512
      %129 = vsyncadd [#allocation19], %s128
      %s130 = sshll.u32 [#allocation18], 4
      %s131 = int_to_ptr.vmem [resolvable:$true] %s130
      %136 = dma.hbm_to_vmem [thread:$0]  %s12, 512, %s131, [#allocation19], 128, 128, 8
    $region53: #{tpu_custom_call.1} parent=1 // pred_fallthru
      _
    // Predicated region
    $region54: #{tpu_custom_call.1} parent=1 // pred_check
      _
    $region55: #{tpu_custom_call.1} parent=1 // pred_check_branch
      %138 = sbr.rel (0) target = $region57
    $region56: #{tpu_custom_call.1} parent=1 // pred_region
      %s140 = ssub.s32 512, 512
      %141 = vsyncadd [#allocation19], %s140
      %s142 = sshll.u32 [#allocation20], 4
      %s143 = int_to_ptr.vmem [resolvable:$true] %s142
      %148 = dma.hbm_to_vmem [thread:$0]  %s13, 512, %s143, [#allocation19], 128, 128, 8
    $region57: #{tpu_custom_call.1} parent=1 // pred_fallthru
      _
    // Predicated region
    $region58: #{tpu_custom_call.1} parent=1 // pred_check
      _
    $region59: #{tpu_custom_call.1} parent=1 // pred_check_branch
      %150 = sbr.rel (0) target = $region61
    $region60: #{tpu_custom_call.1} parent=1 // pred_region
      %s152 = ssub.s32 512, 512
      %153 = vsyncadd [#allocation22], %s152
      %s154 = sshll.u32 [#allocation21], 4
      %s155 = int_to_ptr.vmem [resolvable:$true] %s154
      %160 = dma.hbm_to_vmem [thread:$0]  %s14, 512, %s155, [#allocation22], 128, 128, 8
    $region61: #{tpu_custom_call.1} parent=1 // pred_fallthru
      _
    // Predicated region
    $region62: #{tpu_custom_call.1} parent=1 // pred_check
      _
    $region63: #{tpu_custom_call.1} parent=1 // pred_check_branch
      %162 = sbr.rel (0) target = $region65
    $region64: #{tpu_custom_call.1} parent=1 // pred_region
      _
    $region65: #{tpu_custom_call.1} parent=1 // pred_fallthru
      _
    // Predicated region
    $region66: #{tpu_custom_call.1} parent=1 // pred_check
      _
    $region67: #{tpu_custom_call.1} parent=1 // pred_check_branch
      %164 = sbr.rel (0) target = $region69
    $region68: #{tpu_custom_call.1} parent=1 // pred_region
      %165 = dma.done [#allocation7], 256
    $region69: #{tpu_custom_call.1} parent=1 // pred_fallthru
      _
    // Predicated region
    $region70: #{tpu_custom_call.1} parent=1 // pred_check
      _
    $region71: #{tpu_custom_call.1} parent=1 // pred_check_branch
      %167 = sbr.rel (0) target = $region73
    $region72: #{tpu_custom_call.1} parent=1 // pred_region
      %168 = dma.done [#allocation10], 256
    $region73: #{tpu_custom_call.1} parent=1 // pred_fallthru
      _
    // Predicated region
    $region74: #{tpu_custom_call.1} parent=1 // pred_check
      _
    $region75: #{tpu_custom_call.1} parent=1 // pred_check_branch
      %170 = sbr.rel (0) target = $region77
    $region76: #{tpu_custom_call.1} parent=1 // pred_region
      %171 = dma.done [#allocation10], 512
    $region77: #{tpu_custom_call.1} parent=1 // pred_fallthru
      _
    // Predicated region
    $region78: #{tpu_custom_call.1} parent=1 // pred_check
      _
    $region79: #{tpu_custom_call.1} parent=1 // pred_check_branch
      %173 = sbr.rel (0) target = $region81
    $region80: #{tpu_custom_call.1} parent=1 // pred_region
      %174 = dma.done [#allocation13], 256
    $region81: #{tpu_custom_call.1} parent=1 // pred_fallthru
      _
    // Predicated region
    $region82: #{tpu_custom_call.1} parent=1 // pred_check
      _
    $region83: #{tpu_custom_call.1} parent=1 // pred_check_branch
      %176 = sbr.rel (0) target = $region85
    $region84: #{tpu_custom_call.1} parent=1 // pred_region
      %177 = dma.done [#allocation13], 512
    $region85: #{tpu_custom_call.1} parent=1 // pred_fallthru
      _
    // Predicated region
    $region86: #{tpu_custom_call.1} parent=1 // pred_check
      _
    $region87: #{tpu_custom_call.1} parent=1 // pred_check_branch
      %179 = sbr.rel (0) target = $region89
    $region88: #{tpu_custom_call.1} parent=1 // pred_region
      %180 = dma.done [#allocation16], 512
    $region89: #{tpu_custom_call.1} parent=1 // pred_fallthru
      _
    // Predicated region
    $region90: #{tpu_custom_call.1} parent=1 // pred_check
      _
    $region91: #{tpu_custom_call.1} parent=1 // pred_check_branch
      %182 = sbr.rel (0) target = $region93
    $region92: #{tpu_custom_call.1} parent=1 // pred_region
      %183 = dma.done [#allocation16], 512
    $region93: #{tpu_custom_call.1} parent=1 // pred_fallthru
      _
    // Predicated region
    $region94: #{tpu_custom_call.1} parent=1 // pred_check
      _
    $region95: #{tpu_custom_call.1} parent=1 // pred_check_branch
      %185 = sbr.rel (0) target = $region97
    $region96: #{tpu_custom_call.1} parent=1 // pred_region
      %186 = dma.done [#allocation19], 512
    $region97: #{tpu_custom_call.1} parent=1 // pred_fallthru
      _
    // Predicated region
    $region98: #{tpu_custom_call.1} parent=1 // pred_check
      _
    $region99: #{tpu_custom_call.1} parent=1 // pred_check_branch
      %188 = sbr.rel (0) target = $region101
    $region100: #{tpu_custom_call.1} parent=1 // pred_region
      %189 = dma.done [#allocation19], 512
    $region101: #{tpu_custom_call.1} parent=1 // pred_fallthru
      _
    // Predicated region
    $region102: #{tpu_custom_call.1} parent=1 // pred_check
      _
    $region103: #{tpu_custom_call.1} parent=1 // pred_check_branch
      %191 = sbr.rel (0) target = $region105
    $region104: #{tpu_custom_call.1} parent=1 // pred_region
      %192 = dma.done [#allocation22], 512
    $region105: #{tpu_custom_call.1} parent=1 // pred_fallthru
      _
    %v193 = vld [vmem:[%s0] sm:$0x3]
    %v194 = vld [vmem:[#allocation9] sm:$0xff]
    %v195 = vld [vmem:[#allocation9 + $0x8] sm:$0xff]
    %v196 = vld [vmem:[#allocation11] sm:$0xff]
    %v197 = vld [vmem:[#allocation11 + $0x8] sm:$0xff]
    %v198 = vld [vmem:[#allocation11 + $0x10] sm:$0xff]
    %v199 = vld [vmem:[#allocation11 + $0x18] sm:$0xff]
    %v200 = vld [vmem:[%s4] sm:$0x1]
    loop: start=0, step=1, limit=8
    $region106: #{tpu_custom_call.1} parent=1 // loop_pre_header
      _
    $region107: #{tpu_custom_call.1} parent=1 // loop_header
      %s202 = sphi 0, %s206
      %p203 = scmp.ge.s32.totalorder %s202, 8
      %v207 = vphi 0.0, %v411
    $region108: #{tpu_custom_call.1} parent=1 // loop_header_branch
      %205 = sbr.rel (%p203) target = $region112
    $region109: #{tpu_custom_call.1} parent=1 // loop_body
      %s208 = smul.u32 %s202, 2
      %s209 = scalar_lea.vmem [#allocation6], %s208
      %v210 = vld [vmem:[%s209] sm:$0x3]
      %212 = vrot.lane.b32.xlu0 %v207, 64
      %v213 = vpop.permute.xlu0 %212
      %vm214 = vcmask 261120
      %v215 = vsel %vm214, %v213, 0
      %217 = vmatprep.subr.mxu0 0.0
      %218 = vmatpush1.msra.mxu0 %v196
      %219 = vmatprep.subr.mxu0 0.0
      %220 = vmatpush1.msra.mxu0 %v197
      %221 = vmatprep.subr.mxu0 0.0
      %222 = vmatpush1.msra.mxu0 %v198
      %223 = vmatprep.subr.mxu0 0.0
      %224 = vmatpush1.msra.mxu0 %v199
      %225 = vmatprep.subr.mxu0 0.0
      %226 = vmatpush1.msra.mxu0 0.0
      %227 = vmatprep.subr.mxu0 0.0
      %228 = vmatpush1.msra.mxu0 0.0
      %229 = vmatprep.subr.mxu0 0.0
      %230 = vmatpush1.msra.mxu0 0.0
      %231 = vmatprep.subr.mxu0 0.0
      %232 = vmatpush1.msra.mxu0 0.0
      %233 = vmatprep.subr.mxu0 0.0
      %234 = vmatpush1.msra.mxu0 0.0
      %235 = vmatprep.subr.mxu0 0.0
      %236 = vmatpush1.msra.mxu0 0.0
      %237 = vmatprep.subr.mxu0 0.0
      %238 = vmatpush1.msra.mxu0 0.0
      %239 = vmatprep.subr.mxu0 0.0
      %240 = vmatpush1.msra.mxu0 0.0
      %241 = vmatprep.subr.mxu0 0.0
      %242 = vmatpush1.msra.mxu0 0.0
      %243 = vmatprep.subr.mxu0 0.0
      %244 = vmatpush1.msra.mxu0 0.0
      %245 = vmatprep.subr.mxu0 0.0
      %246 = vmatpush1.msra.mxu0 0.0
      %247 = vmatprep.subr.mxu0 0.0
      %248 = vmatpush1.msra.mxu0 0.0
      %249 = vmatprep.subr.mxu0 0.0
      %250 = vmatpush1.msra.mxu0 0.0
      %251 = vmatprep.subr.mxu0 0.0
      %252 = vmatpush1.msra.mxu0 0.0
      %253 = vmatprep.subr.mxu0 0.0
      %254 = vmatpush1.msra.mxu0 0.0
      %255 = vmatprep.subr.mxu0 0.0
      %256 = vmatpush1.msra.mxu0 0.0
      %257 = vmatprep.subr.mxu0 0.0
      %258 = vmatpush1.msra.mxu0 0.0
      %259 = vmatprep.subr.mxu0 0.0
      %260 = vmatpush1.msra.mxu0 0.0
      %261 = vmatprep.subr.mxu0 0.0
      %262 = vmatpush1.msra.mxu0 0.0
      %263 = vmatprep.subr.mxu0 0.0
      %264 = vmatpush1.msra.mxu0 0.0
      %265 = vmatprep.subr.mxu0 0.0
      %266 = vmatpush1.msra.mxu0 0.0
      %267 = vmatprep.subr.mxu0 0.0
      %268 = vmatpush1.msra.mxu0 0.0
      %269 = vmatprep.subr.mxu0 0.0
      %270 = vmatpush1.msra.mxu0 0.0
      %271 = vmatprep.subr.mxu0 0.0
      %272 = vmatpush1.msra.mxu0 0.0
      %273 = vmatprep.subr.mxu0 0.0
      %274 = vmatpush1.msra.mxu0 0.0
      %275 = vmatprep.subr.mxu0 0.0
      %276 = vmatpush1.msra.mxu0 0.0
      %277 = vmatprep.subr.mxu0 0.0
      %278 = vmatpush1.msra.mxu0 0.0
      %279 = vmatprep.subr.mxu0 0.0
      %280 = vmatpush1.msra.mxu0 0.0
      %281 = vmatprep.mubr.f32.mxu0 0.0
      %282 = vmatmul.mubr.f32.gmra.mrb[0].mxu0 %v215
      %v283 = vpop.f32.mrb[0].mxu0
      %v284 = vadd.f32 0.0, %v283
      %v285 = vpop.f32.mrb[0].mxu0
      %286 = vdwg.mxu0
      %vm287 = vcmask 130048
      %v289 = vsel %vm287, %v210, 0
      %291 = vmatprep.subr.mxu0 0.0
      %292 = vmatpush1.msra.mxu0 %v194
      %293 = vmatprep.subr.mxu0 0.0
      %294 = vmatpush1.msra.mxu0 %v195
      %295 = vmatprep.subr.mxu0 0.0
      %296 = vmatpush1.msra.mxu0 0.0
      %297 = vmatprep.subr.mxu0 0.0
      %298 = vmatpush1.msra.mxu0 0.0
      %299 = vmatprep.subr.mxu0 0.0
      %300 = vmatpush1.msra.mxu0 0.0
      %301 = vmatprep.subr.mxu0 0.0
      %302 = vmatpush1.msra.mxu0 0.0
      %303 = vmatprep.subr.mxu0 0.0
      %304 = vmatpush1.msra.mxu0 0.0
      %305 = vmatprep.subr.mxu0 0.0
      %306 = vmatpush1.msra.mxu0 0.0
      %307 = vmatprep.subr.mxu0 0.0
      %308 = vmatpush1.msra.mxu0 0.0
      %309 = vmatprep.subr.mxu0 0.0
      %310 = vmatpush1.msra.mxu0 0.0
      %311 = vmatprep.subr.mxu0 0.0
      %312 = vmatpush1.msra.mxu0 0.0
      %313 = vmatprep.subr.mxu0 0.0
      %314 = vmatpush1.msra.mxu0 0.0
      %315 = vmatprep.subr.mxu0 0.0
      %316 = vmatpush1.msra.mxu0 0.0
      %317 = vmatprep.subr.mxu0 0.0
      %318 = vmatpush1.msra.mxu0 0.0
      %319 = vmatprep.subr.mxu0 0.0
      %320 = vmatpush1.msra.mxu0 0.0
      %321 = vmatprep.subr.mxu0 0.0
      %322 = vmatpush1.msra.mxu0 0.0
      %323 = vmatprep.subr.mxu0 0.0
      %324 = vmatpush1.msra.mxu0 0.0
      %325 = vmatprep.subr.mxu0 0.0
      %326 = vmatpush1.msra.mxu0 0.0
      %327 = vmatprep.subr.mxu0 0.0
      %328 = vmatpush1.msra.mxu0 0.0
      %329 = vmatprep.subr.mxu0 0.0
      %330 = vmatpush1.msra.mxu0 0.0
      %331 = vmatprep.subr.mxu0 0.0
      %332 = vmatpush1.msra.mxu0 0.0
      %333 = vmatprep.subr.mxu0 0.0
      %334 = vmatpush1.msra.mxu0 0.0
      %335 = vmatprep.subr.mxu0 0.0
      %336 = vmatpush1.msra.mxu0 0.0
      %337 = vmatprep.subr.mxu0 0.0
      %338 = vmatpush1.msra.mxu0 0.0
      %339 = vmatprep.subr.mxu0 0.0
      %340 = vmatpush1.msra.mxu0 0.0
      %341 = vmatprep.subr.mxu0 0.0
      %342 = vmatpush1.msra.mxu0 0.0
      %343 = vmatprep.subr.mxu0 0.0
      %344 = vmatpush1.msra.mxu0 0.0
      %345 = vmatprep.subr.mxu0 0.0
      %346 = vmatpush1.msra.mxu0 0.0
      %347 = vmatprep.subr.mxu0 0.0
      %348 = vmatpush1.msra.mxu0 0.0
      %349 = vmatprep.subr.mxu0 0.0
      %350 = vmatpush1.msra.mxu0 0.0
      %351 = vmatprep.subr.mxu0 0.0
      %352 = vmatpush1.msra.mxu0 0.0
      %353 = vmatprep.subr.mxu0 0.0
      %354 = vmatpush1.msra.mxu0 0.0
      %355 = vmatprep.mubr.f32.mxu0 0.0
      %356 = vmatmul.mubr.f32.gmra.mrb[0].mxu0 %v289
      %v357 = vpop.f32.mrb[0].mxu0
      %v358 = vadd.f32 %v284, %v357
      %v359 = vpop.f32.mrb[0].mxu0
      %360 = vdwg.mxu0
      %v362 = vlaneseq
      %v363 = vshrl.u32 %v362, 7
      %v364 = vsub.s32 0, %v363
      %v365 = vrot.slane %v200, %v364
      %v367 = vadd.f32 %v358, %v365
      %v368 = vxor.u32 %v367, 2147483648
      %v369 = vmul.f32 %v368, 1.442695
      %v370 = vpow.pop %v369
      %v371 = vadd.f32 %v370, 1.0
      %v372 = vrcp.pop %v371
      %v373 = vmul.f32 1.0, %v372
      %375 = vrot.lane.b32.xlu0 %v367, 32
      %v376 = vpop.permute.xlu0 %375
      %v378 = vmul.f32 %v373, %v376
      %380 = vrot.lane.b32.xlu0 %v378, 64
      %v381 = vpop.permute.xlu0 %380
      %v383 = vadd.f32 %v367, %v381
      %v384 = vtanh.pop %v383
      %v385 = vsub.f32 %v207, %v384
      %387 = vrot.lane.b32.xlu0 %v385, 96
      %v388 = vpop.permute.xlu0 %387
      %v390 = vmul.f32 %v373, %v388
      %392 = vrot.lane.b32.xlu0 %v390, 32
      %v393 = vpop.permute.xlu0 %392
      %v395 = vadd.f32 %v384, %v393
      %v396 = vstv %s202
      %vm397 = vcmp.lt.s32.totalorder %v396, %v193
      %v398 = vsel %vm397, 1, 0
      %399 = vset.pattern.permute.xlu0 0
      %400 = vperm.xlu0 %399, %v398
      %v401 = vpop.permute.xlu0 %400
      %vm402 = vcmp.eq.s32.totalorder %v401, 1
      %v403 = vsel %vm402, %v395, 0.0
      %405 = vrot.lane.b32.xlu0 %v403, 64
      %v406 = vpop.permute.xlu0 %405
      %s408 = scalar_lea.vmem [#allocation2], %s208
      %vm409 = vcmask 254976
      %410 = vst.msk [vmem:[%s408] sm:$0x3] %vm409, %v406
      %v411 = vsel %vm402, %v395, %v207
    $region110: #{tpu_custom_call.1} parent=1 // loop_footer
      %s206 = sadd.s32 1, %s202
    $region111: #{tpu_custom_call.1} parent=1 // loop_footer_branch
      %201 = sbr.rel target = $region107
    $region112: #{tpu_custom_call.1} parent=1 // loop_exit
      _
    %v412 = vld [vmem:[#allocation12] sm:$0xff]
    %v413 = vld [vmem:[#allocation12 + $0x8] sm:$0xff]
    %v414 = vld [vmem:[#allocation14] sm:$0xff]
    %v415 = vld [vmem:[#allocation14 + $0x8] sm:$0xff]
    %v416 = vld [vmem:[#allocation14 + $0x10] sm:$0xff]
    %v417 = vld [vmem:[#allocation14 + $0x18] sm:$0xff]
    %v418 = vld [vmem:[%s7] sm:$0x1]
    loop: start=0, step=1, limit=8
    $region113: #{tpu_custom_call.1} parent=1 // loop_pre_header
      _
    $region114: #{tpu_custom_call.1} parent=1 // loop_header
      %s420 = sphi 0, %s424
      %p421 = scmp.ge.s32.totalorder %s420, 8
      %v425 = vphi 0.0, %v630
    $region115: #{tpu_custom_call.1} parent=1 // loop_header_branch
      %423 = sbr.rel (%p421) target = $region119
    $region116: #{tpu_custom_call.1} parent=1 // loop_body
      %s426 = ssub.s32 7, %s420
      %s427 = smul.u32 %s426, 2
      %s428 = scalar_lea.vmem [#allocation6], %s427
      %v429 = vld [vmem:[%s428] sm:$0x3]
      %431 = vrot.lane.b32.xlu0 %v425, 64
      %v432 = vpop.permute.xlu0 %431
      %vm433 = vcmask 261120
      %v434 = vsel %vm433, %v432, 0
      %436 = vmatprep.subr.mxu0 0.0
      %437 = vmatpush1.msra.mxu0 %v414
      %438 = vmatprep.subr.mxu0 0.0
      %439 = vmatpush1.msra.mxu0 %v415
      %440 = vmatprep.subr.mxu0 0.0
      %441 = vmatpush1.msra.mxu0 %v416
      %442 = vmatprep.subr.mxu0 0.0
      %443 = vmatpush1.msra.mxu0 %v417
      %444 = vmatprep.subr.mxu0 0.0
      %445 = vmatpush1.msra.mxu0 0.0
      %446 = vmatprep.subr.mxu0 0.0
      %447 = vmatpush1.msra.mxu0 0.0
      %448 = vmatprep.subr.mxu0 0.0
      %449 = vmatpush1.msra.mxu0 0.0
      %450 = vmatprep.subr.mxu0 0.0
      %451 = vmatpush1.msra.mxu0 0.0
      %452 = vmatprep.subr.mxu0 0.0
      %453 = vmatpush1.msra.mxu0 0.0
      %454 = vmatprep.subr.mxu0 0.0
      %455 = vmatpush1.msra.mxu0 0.0
      %456 = vmatprep.subr.mxu0 0.0
      %457 = vmatpush1.msra.mxu0 0.0
      %458 = vmatprep.subr.mxu0 0.0
      %459 = vmatpush1.msra.mxu0 0.0
      %460 = vmatprep.subr.mxu0 0.0
      %461 = vmatpush1.msra.mxu0 0.0
      %462 = vmatprep.subr.mxu0 0.0
      %463 = vmatpush1.msra.mxu0 0.0
      %464 = vmatprep.subr.mxu0 0.0
      %465 = vmatpush1.msra.mxu0 0.0
      %466 = vmatprep.subr.mxu0 0.0
      %467 = vmatpush1.msra.mxu0 0.0
      %468 = vmatprep.subr.mxu0 0.0
      %469 = vmatpush1.msra.mxu0 0.0
      %470 = vmatprep.subr.mxu0 0.0
      %471 = vmatpush1.msra.mxu0 0.0
      %472 = vmatprep.subr.mxu0 0.0
      %473 = vmatpush1.msra.mxu0 0.0
      %474 = vmatprep.subr.mxu0 0.0
      %475 = vmatpush1.msra.mxu0 0.0
      %476 = vmatprep.subr.mxu0 0.0
      %477 = vmatpush1.msra.mxu0 0.0
      %478 = vmatprep.subr.mxu0 0.0
      %479 = vmatpush1.msra.mxu0 0.0
      %480 = vmatprep.subr.mxu0 0.0
      %481 = vmatpush1.msra.mxu0 0.0
      %482 = vmatprep.subr.mxu0 0.0
      %483 = vmatpush1.msra.mxu0 0.0
      %484 = vmatprep.subr.mxu0 0.0
      %485 = vmatpush1.msra.mxu0 0.0
      %486 = vmatprep.subr.mxu0 0.0
      %487 = vmatpush1.msra.mxu0 0.0
      %488 = vmatprep.subr.mxu0 0.0
      %489 = vmatpush1.msra.mxu0 0.0
      %490 = vmatprep.subr.mxu0 0.0
      %491 = vmatpush1.msra.mxu0 0.0
      %492 = vmatprep.subr.mxu0 0.0
      %493 = vmatpush1.msra.mxu0 0.0
      %494 = vmatprep.subr.mxu0 0.0
      %495 = vmatpush1.msra.mxu0 0.0
      %496 = vmatprep.subr.mxu0 0.0
      %497 = vmatpush1.msra.mxu0 0.0
      %498 = vmatprep.subr.mxu0 0.0
      %499 = vmatpush1.msra.mxu0 0.0
      %500 = vmatprep.mubr.f32.mxu0 0.0
      %501 = vmatmul.mubr.f32.gmra.mrb[0].mxu0 %v434
      %v502 = vpop.f32.mrb[0].mxu0
      %v503 = vadd.f32 0.0, %v502
      %v504 = vpop.f32.mrb[0].mxu0
      %505 = vdwg.mxu0
      %vm506 = vcmask 130048
      %v508 = vsel %vm506, %v429, 0
      %510 = vmatprep.subr.mxu0 0.0
      %511 = vmatpush1.msra.mxu0 %v412
      %512 = vmatprep.subr.mxu0 0.0
      %513 = vmatpush1.msra.mxu0 %v413
      %514 = vmatprep.subr.mxu0 0.0
      %515 = vmatpush1.msra.mxu0 0.0
      %516 = vmatprep.subr.mxu0 0.0
      %517 = vmatpush1.msra.mxu0 0.0
      %518 = vmatprep.subr.mxu0 0.0
      %519 = vmatpush1.msra.mxu0 0.0
      %520 = vmatprep.subr.mxu0 0.0
      %521 = vmatpush1.msra.mxu0 0.0
      %522 = vmatprep.subr.mxu0 0.0
      %523 = vmatpush1.msra.mxu0 0.0
      %524 = vmatprep.subr.mxu0 0.0
      %525 = vmatpush1.msra.mxu0 0.0
      %526 = vmatprep.subr.mxu0 0.0
      %527 = vmatpush1.msra.mxu0 0.0
      %528 = vmatprep.subr.mxu0 0.0
      %529 = vmatpush1.msra.mxu0 0.0
      %530 = vmatprep.subr.mxu0 0.0
      %531 = vmatpush1.msra.mxu0 0.0
      %532 = vmatprep.subr.mxu0 0.0
      %533 = vmatpush1.msra.mxu0 0.0
      %534 = vmatprep.subr.mxu0 0.0
      %535 = vmatpush1.msra.mxu0 0.0
      %536 = vmatprep.subr.mxu0 0.0
      %537 = vmatpush1.msra.mxu0 0.0
      %538 = vmatprep.subr.mxu0 0.0
      %539 = vmatpush1.msra.mxu0 0.0
      %540 = vmatprep.subr.mxu0 0.0
      %541 = vmatpush1.msra.mxu0 0.0
      %542 = vmatprep.subr.mxu0 0.0
      %543 = vmatpush1.msra.mxu0 0.0
      %544 = vmatprep.subr.mxu0 0.0
      %545 = vmatpush1.msra.mxu0 0.0
      %546 = vmatprep.subr.mxu0 0.0
      %547 = vmatpush1.msra.mxu0 0.0
      %548 = vmatprep.subr.mxu0 0.0
      %549 = vmatpush1.msra.mxu0 0.0
      %550 = vmatprep.subr.mxu0 0.0
      %551 = vmatpush1.msra.mxu0 0.0
      %552 = vmatprep.subr.mxu0 0.0
      %553 = vmatpush1.msra.mxu0 0.0
      %554 = vmatprep.subr.mxu0 0.0
      %555 = vmatpush1.msra.mxu0 0.0
      %556 = vmatprep.subr.mxu0 0.0
      %557 = vmatpush1.msra.mxu0 0.0
      %558 = vmatprep.subr.mxu0 0.0
      %559 = vmatpush1.msra.mxu0 0.0
      %560 = vmatprep.subr.mxu0 0.0
      %561 = vmatpush1.msra.mxu0 0.0
      %562 = vmatprep.subr.mxu0 0.0
      %563 = vmatpush1.msra.mxu0 0.0
      %564 = vmatprep.subr.mxu0 0.0
      %565 = vmatpush1.msra.mxu0 0.0
      %566 = vmatprep.subr.mxu0 0.0
      %567 = vmatpush1.msra.mxu0 0.0
      %568 = vmatprep.subr.mxu0 0.0
      %569 = vmatpush1.msra.mxu0 0.0
      %570 = vmatprep.subr.mxu0 0.0
      %571 = vmatpush1.msra.mxu0 0.0
      %572 = vmatprep.subr.mxu0 0.0
      %573 = vmatpush1.msra.mxu0 0.0
      %574 = vmatprep.mubr.f32.mxu0 0.0
      %575 = vmatmul.mubr.f32.gmra.mrb[0].mxu0 %v508
      %v576 = vpop.f32.mrb[0].mxu0
      %v577 = vadd.f32 %v503, %v576
      %v578 = vpop.f32.mrb[0].mxu0
      %579 = vdwg.mxu0
      %v581 = vlaneseq
      %v582 = vshrl.u32 %v581, 7
      %v583 = vsub.s32 0, %v582
      %v584 = vrot.slane %v418, %v583
      %v586 = vadd.f32 %v577, %v584
      %v587 = vxor.u32 %v586, 2147483648
      %v588 = vmul.f32 %v587, 1.442695
      %v589 = vpow.pop %v588
      %v590 = vadd.f32 %v589, 1.0
      %v591 = vrcp.pop %v590
      %v592 = vmul.f32 1.0, %v591
      %594 = vrot.lane.b32.xlu0 %v586, 32
      %v595 = vpop.permute.xlu0 %594
      %v597 = vmul.f32 %v592, %v595
      %599 = vrot.lane.b32.xlu0 %v597, 64
      %v600 = vpop.permute.xlu0 %599
      %v602 = vadd.f32 %v586, %v600
      %v603 = vtanh.pop %v602
      %v604 = vsub.f32 %v425, %v603
      %606 = vrot.lane.b32.xlu0 %v604, 96
      %v607 = vpop.permute.xlu0 %606
      %v609 = vmul.f32 %v592, %v607
      %611 = vrot.lane.b32.xlu0 %v609, 32
      %v612 = vpop.permute.xlu0 %611
      %v614 = vadd.f32 %v603, %v612
      %v615 = vstv %s426
      %vm616 = vcmp.lt.s32.totalorder %v615, %v193
      %v617 = vsel %vm616, 1, 0
      %618 = vset.pattern.permute.xlu0 0
      %619 = vperm.xlu0 %618, %v617
      %v620 = vpop.permute.xlu0 %619
      %vm621 = vcmp.eq.s32.totalorder %v620, 1
      %v622 = vsel %vm621, %v614, 0.0
      %624 = vrot.lane.b32.xlu0 %v622, 64
      %v625 = vpop.permute.xlu0 %624
      %s627 = scalar_lea.vmem [#allocation3], %s427
      %vm628 = vcmask 254976
      %629 = vst.msk [vmem:[%s627] sm:$0x3] %vm628, %v625
      %v630 = vsel %vm621, %v614, %v425
    $region117: #{tpu_custom_call.1} parent=1 // loop_footer
      %s424 = sadd.s32 1, %s420
    $region118: #{tpu_custom_call.1} parent=1 // loop_footer_branch
      %419 = sbr.rel target = $region114
    $region119: #{tpu_custom_call.1} parent=1 // loop_exit
      _
    %v631 = vld [vmem:[%s8] sm:$0xff]
    %v632 = vld [vmem:[%s8 + $0x8] sm:$0xff]
    %v633 = vld [vmem:[%s8 + $0x10] sm:$0xff]
    %v634 = vld [vmem:[%s8 + $0x18] sm:$0xff]
    %v635 = vld [vmem:[#allocation15] sm:$0xff]
    %v636 = vld [vmem:[#allocation15 + $0x8] sm:$0xff]
    %v637 = vld [vmem:[#allocation15 + $0x10] sm:$0xff]
    %v638 = vld [vmem:[#allocation15 + $0x18] sm:$0xff]
    %v639 = vld [vmem:[#allocation17] sm:$0xff]
    %v640 = vld [vmem:[#allocation17 + $0x8] sm:$0xff]
    %v641 = vld [vmem:[#allocation17 + $0x10] sm:$0xff]
    %v642 = vld [vmem:[#allocation17 + $0x18] sm:$0xff]
    %v643 = vld [vmem:[%s11] sm:$0x1]
    loop: start=0, step=1, limit=8
    $region120: #{tpu_custom_call.1} parent=1 // loop_pre_header
      _
    $region121: #{tpu_custom_call.1} parent=1 // loop_header
      %s645 = sphi 0, %s649
      %p646 = scmp.ge.s32.totalorder %s645, 8
      %v650 = vphi 0.0, %v929
    $region122: #{tpu_custom_call.1} parent=1 // loop_header_branch
      %648 = sbr.rel (%p646) target = $region126
    $region123: #{tpu_custom_call.1} parent=1 // loop_body
      %s651 = smul.u32 %s645, 2
      %s652 = scalar_lea.vmem [#allocation2], %s651
      %v653 = vld [vmem:[%s652] sm:$0x3]
      %s654 = scalar_lea.vmem [#allocation3], %s651
      %v655 = vld [vmem:[%s654] sm:$0x3]
      %vm656 = vcmask 261120
      %v658 = vsel %vm656, %v655, 0
      %660 = vmatprep.subr.mxu0 0.0
      %661 = vmatpush1.msra.mxu0 %v635
      %662 = vmatprep.subr.mxu0 0.0
      %663 = vmatpush1.msra.mxu0 %v636
      %664 = vmatprep.subr.mxu0 0.0
      %665 = vmatpush1.msra.mxu0 %v637
      %666 = vmatprep.subr.mxu0 0.0
      %667 = vmatpush1.msra.mxu0 %v638
      %668 = vmatprep.subr.mxu0 0.0
      %669 = vmatpush1.msra.mxu0 0.0
      %670 = vmatprep.subr.mxu0 0.0
      %671 = vmatpush1.msra.mxu0 0.0
      %672 = vmatprep.subr.mxu0 0.0
      %673 = vmatpush1.msra.mxu0 0.0
      %674 = vmatprep.subr.mxu0 0.0
      %675 = vmatpush1.msra.mxu0 0.0
      %676 = vmatprep.subr.mxu0 0.0
      %677 = vmatpush1.msra.mxu0 0.0
      %678 = vmatprep.subr.mxu0 0.0
      %679 = vmatpush1.msra.mxu0 0.0
      %680 = vmatprep.subr.mxu0 0.0
      %681 = vmatpush1.msra.mxu0 0.0
      %682 = vmatprep.subr.mxu0 0.0
      %683 = vmatpush1.msra.mxu0 0.0
      %684 = vmatprep.subr.mxu0 0.0
      %685 = vmatpush1.msra.mxu0 0.0
      %686 = vmatprep.subr.mxu0 0.0
      %687 = vmatpush1.msra.mxu0 0.0
      %688 = vmatprep.subr.mxu0 0.0
      %689 = vmatpush1.msra.mxu0 0.0
      %690 = vmatprep.subr.mxu0 0.0
      %691 = vmatpush1.msra.mxu0 0.0
      %692 = vmatprep.subr.mxu0 0.0
      %693 = vmatpush1.msra.mxu0 0.0
      %694 = vmatprep.subr.mxu0 0.0
      %695 = vmatpush1.msra.mxu0 0.0
      %696 = vmatprep.subr.mxu0 0.0
      %697 = vmatpush1.msra.mxu0 0.0
      %698 = vmatprep.subr.mxu0 0.0
      %699 = vmatpush1.msra.mxu0 0.0
      %700 = vmatprep.subr.mxu0 0.0
      %701 = vmatpush1.msra.mxu0 0.0
      %702 = vmatprep.subr.mxu0 0.0
      %703 = vmatpush1.msra.mxu0 0.0
      %704 = vmatprep.subr.mxu0 0.0
      %705 = vmatpush1.msra.mxu0 0.0
      %706 = vmatprep.subr.mxu0 0.0
      %707 = vmatpush1.msra.mxu0 0.0
      %708 = vmatprep.subr.mxu0 0.0
      %709 = vmatpush1.msra.mxu0 0.0
      %710 = vmatprep.subr.mxu0 0.0
      %711 = vmatpush1.msra.mxu0 0.0
      %712 = vmatprep.subr.mxu0 0.0
      %713 = vmatpush1.msra.mxu0 0.0
      %714 = vmatprep.subr.mxu0 0.0
      %715 = vmatpush1.msra.mxu0 0.0
      %716 = vmatprep.subr.mxu0 0.0
      %717 = vmatpush1.msra.mxu0 0.0
      %718 = vmatprep.subr.mxu0 0.0
      %719 = vmatpush1.msra.mxu0 0.0
      %720 = vmatprep.subr.mxu0 0.0
      %721 = vmatpush1.msra.mxu0 0.0
      %722 = vmatprep.subr.mxu0 0.0
      %723 = vmatpush1.msra.mxu0 0.0
      %724 = vmatprep.mubr.f32.mxu0 0.0
      %725 = vmatmul.mubr.f32.gmra.mrb[0].mxu0 %v658
      %v726 = vpop.f32.mrb[0].mxu0
      %v727 = vadd.f32 0.0, %v726
      %v728 = vpop.f32.mrb[0].mxu0
      %729 = vdwg.mxu0
      %v731 = vsel %vm656, %v653, 0
      %733 = vmatprep.subr.mxu0 0.0
      %734 = vmatpush1.msra.mxu0 %v631
      %735 = vmatprep.subr.mxu0 0.0
      %736 = vmatpush1.msra.mxu0 %v632
      %737 = vmatprep.subr.mxu0 0.0
      %738 = vmatpush1.msra.mxu0 %v633
      %739 = vmatprep.subr.mxu0 0.0
      %740 = vmatpush1.msra.mxu0 %v634
      %741 = vmatprep.subr.mxu0 0.0
      %742 = vmatpush1.msra.mxu0 0.0
      %743 = vmatprep.subr.mxu0 0.0
      %744 = vmatpush1.msra.mxu0 0.0
      %745 = vmatprep.subr.mxu0 0.0
      %746 = vmatpush1.msra.mxu0 0.0
      %747 = vmatprep.subr.mxu0 0.0
      %748 = vmatpush1.msra.mxu0 0.0
      %749 = vmatprep.subr.mxu0 0.0
      %750 = vmatpush1.msra.mxu0 0.0
      %751 = vmatprep.subr.mxu0 0.0
      %752 = vmatpush1.msra.mxu0 0.0
      %753 = vmatprep.subr.mxu0 0.0
      %754 = vmatpush1.msra.mxu0 0.0
      %755 = vmatprep.subr.mxu0 0.0
      %756 = vmatpush1.msra.mxu0 0.0
      %757 = vmatprep.subr.mxu0 0.0
      %758 = vmatpush1.msra.mxu0 0.0
      %759 = vmatprep.subr.mxu0 0.0
      %760 = vmatpush1.msra.mxu0 0.0
      %761 = vmatprep.subr.mxu0 0.0
      %762 = vmatpush1.msra.mxu0 0.0
      %763 = vmatprep.subr.mxu0 0.0
      %764 = vmatpush1.msra.mxu0 0.0
      %765 = vmatprep.subr.mxu0 0.0
      %766 = vmatpush1.msra.mxu0 0.0
      %767 = vmatprep.subr.mxu0 0.0
      %768 = vmatpush1.msra.mxu0 0.0
      %769 = vmatprep.subr.mxu0 0.0
      %770 = vmatpush1.msra.mxu0 0.0
      %771 = vmatprep.subr.mxu0 0.0
      %772 = vmatpush1.msra.mxu0 0.0
      %773 = vmatprep.subr.mxu0 0.0
      %774 = vmatpush1.msra.mxu0 0.0
      %775 = vmatprep.subr.mxu0 0.0
      %776 = vmatpush1.msra.mxu0 0.0
      %777 = vmatprep.subr.mxu0 0.0
      %778 = vmatpush1.msra.mxu0 0.0
      %779 = vmatprep.subr.mxu0 0.0
      %780 = vmatpush1.msra.mxu0 0.0
      %781 = vmatprep.subr.mxu0 0.0
      %782 = vmatpush1.msra.mxu0 0.0
      %783 = vmatprep.subr.mxu0 0.0
      %784 = vmatpush1.msra.mxu0 0.0
      %785 = vmatprep.subr.mxu0 0.0
      %786 = vmatpush1.msra.mxu0 0.0
      %787 = vmatprep.subr.mxu0 0.0
      %788 = vmatpush1.msra.mxu0 0.0
      %789 = vmatprep.subr.mxu0 0.0
      %790 = vmatpush1.msra.mxu0 0.0
      %791 = vmatprep.subr.mxu0 0.0
      %792 = vmatpush1.msra.mxu0 0.0
      %793 = vmatprep.subr.mxu0 0.0
      %794 = vmatpush1.msra.mxu0 0.0
      %795 = vmatprep.subr.mxu0 0.0
      %796 = vmatpush1.msra.mxu0 0.0
      %797 = vmatprep.mubr.f32.mxu0 0.0
      %798 = vmatmul.mubr.f32.gmra.mrb[0].mxu0 %v731
      %v799 = vpop.f32.mrb[0].mxu0
      %v800 = vadd.f32 %v727, %v799
      %v801 = vpop.f32.mrb[0].mxu0
      %802 = vdwg.mxu0
      %804 = vrot.lane.b32.xlu0 %v650, 64
      %v805 = vpop.permute.xlu0 %804
      %v806 = vsel %vm656, %v805, 0
      %808 = vmatprep.subr.mxu0 0.0
      %809 = vmatpush1.msra.mxu0 %v639
      %810 = vmatprep.subr.mxu0 0.0
      %811 = vmatpush1.msra.mxu0 %v640
      %812 = vmatprep.subr.mxu0 0.0
      %813 = vmatpush1.msra.mxu0 %v641
      %814 = vmatprep.subr.mxu0 0.0
      %815 = vmatpush1.msra.mxu0 %v642
      %816 = vmatprep.subr.mxu0 0.0
      %817 = vmatpush1.msra.mxu0 0.0
      %818 = vmatprep.subr.mxu0 0.0
      %819 = vmatpush1.msra.mxu0 0.0
      %820 = vmatprep.subr.mxu0 0.0
      %821 = vmatpush1.msra.mxu0 0.0
      %822 = vmatprep.subr.mxu0 0.0
      %823 = vmatpush1.msra.mxu0 0.0
      %824 = vmatprep.subr.mxu0 0.0
      %825 = vmatpush1.msra.mxu0 0.0
      %826 = vmatprep.subr.mxu0 0.0
      %827 = vmatpush1.msra.mxu0 0.0
      %828 = vmatprep.subr.mxu0 0.0
      %829 = vmatpush1.msra.mxu0 0.0
      %830 = vmatprep.subr.mxu0 0.0
      %831 = vmatpush1.msra.mxu0 0.0
      %832 = vmatprep.subr.mxu0 0.0
      %833 = vmatpush1.msra.mxu0 0.0
      %834 = vmatprep.subr.mxu0 0.0
      %835 = vmatpush1.msra.mxu0 0.0
      %836 = vmatprep.subr.mxu0 0.0
      %837 = vmatpush1.msra.mxu0 0.0
      %838 = vmatprep.subr.mxu0 0.0
      %839 = vmatpush1.msra.mxu0 0.0
      %840 = vmatprep.subr.mxu0 0.0
      %841 = vmatpush1.msra.mxu0 0.0
      %842 = vmatprep.subr.mxu0 0.0
      %843 = vmatpush1.msra.mxu0 0.0
      %844 = vmatprep.subr.mxu0 0.0
      %845 = vmatpush1.msra.mxu0 0.0
      %846 = vmatprep.subr.mxu0 0.0
      %847 = vmatpush1.msra.mxu0 0.0
      %848 = vmatprep.subr.mxu0 0.0
      %849 = vmatpush1.msra.mxu0 0.0
      %850 = vmatprep.subr.mxu0 0.0
      %851 = vmatpush1.msra.mxu0 0.0
      %852 = vmatprep.subr.mxu0 0.0
      %853 = vmatpush1.msra.mxu0 0.0
      %854 = vmatprep.subr.mxu0 0.0
      %855 = vmatpush1.msra.mxu0 0.0
      %856 = vmatprep.subr.mxu0 0.0
      %857 = vmatpush1.msra.mxu0 0.0
      %858 = vmatprep.subr.mxu0 0.0
      %859 = vmatpush1.msra.mxu0 0.0
      %860 = vmatprep.subr.mxu0 0.0
      %861 = vmatpush1.msra.mxu0 0.0
      %862 = vmatprep.subr.mxu0 0.0
      %863 = vmatpush1.msra.mxu0 0.0
      %864 = vmatprep.subr.mxu0 0.0
      %865 = vmatpush1.msra.mxu0 0.0
      %866 = vmatprep.subr.mxu0 0.0
      %867 = vmatpush1.msra.mxu0 0.0
      %868 = vmatprep.subr.mxu0 0.0
      %869 = vmatpush1.msra.mxu0 0.0
      %870 = vmatprep.subr.mxu0 0.0
      %871 = vmatpush1.msra.mxu0 0.0
      %872 = vmatprep.mubr.f32.mxu0 0.0
      %873 = vmatmul.mubr.f32.gmra.mrb[0].mxu0 %v806
      %v874 = vpop.f32.mrb[0].mxu0
      %v875 = vadd.f32 0.0, %v874
      %v876 = vpop.f32.mrb[0].mxu0
      %877 = vdwg.mxu0
      %v878 = vadd.f32 %v800, %v875
      %v880 = vlaneseq
      %v881 = vshrl.u32 %v880, 7
      %v882 = vsub.s32 0, %v881
      %v883 = vrot.slane %v643, %v882
      %v885 = vadd.f32 %v878, %v883
      %v886 = vxor.u32 %v885, 2147483648
      %v887 = vmul.f32 %v886, 1.442695
      %v888 = vpow.pop %v887
      %v889 = vadd.f32 %v888, 1.0
      %v890 = vrcp.pop %v889
      %v891 = vmul.f32 1.0, %v890
      %893 = vrot.lane.b32.xlu0 %v885, 32
      %v894 = vpop.permute.xlu0 %893
      %v896 = vmul.f32 %v891, %v894
      %898 = vrot.lane.b32.xlu0 %v896, 64
      %v899 = vpop.permute.xlu0 %898
      %v901 = vadd.f32 %v885, %v899
      %v902 = vtanh.pop %v901
      %v903 = vsub.f32 %v650, %v902
      %905 = vrot.lane.b32.xlu0 %v903, 96
      %v906 = vpop.permute.xlu0 %905
      %v908 = vmul.f32 %v891, %v906
      %910 = vrot.lane.b32.xlu0 %v908, 32
      %v911 = vpop.permute.xlu0 %910
      %v913 = vadd.f32 %v902, %v911
      %v914 = vstv %s645
      %vm915 = vcmp.lt.s32.totalorder %v914, %v193
      %v916 = vsel %vm915, 1, 0
      %917 = vset.pattern.permute.xlu0 0
      %918 = vperm.xlu0 %917, %v916
      %v919 = vpop.permute.xlu0 %918
      %vm920 = vcmp.eq.s32.totalorder %v919, 1
      %v921 = vsel %vm920, %v913, 0.0
      %923 = vrot.lane.b32.xlu0 %v921, 64
      %v924 = vpop.permute.xlu0 %923
      %s926 = scalar_lea.vmem [#allocation23], %s651
      %vm927 = vcmask 254976
      %928 = vst.msk [vmem:[%s926] sm:$0x3] %vm927, %v924
      %v929 = vsel %vm920, %v913, %v650
    $region124: #{tpu_custom_call.1} parent=1 // loop_footer
      %s649 = sadd.s32 1, %s645
    $region125: #{tpu_custom_call.1} parent=1 // loop_footer_branch
      %644 = sbr.rel target = $region121
    $region126: #{tpu_custom_call.1} parent=1 // loop_exit
      _
    %v930 = vld [vmem:[#allocation18] sm:$0xff]
    %v931 = vld [vmem:[#allocation18 + $0x8] sm:$0xff]
    %v932 = vld [vmem:[#allocation18 + $0x10] sm:$0xff]
    %v933 = vld [vmem:[#allocation18 + $0x18] sm:$0xff]
    %v934 = vld [vmem:[#allocation20] sm:$0xff]
    %v935 = vld [vmem:[#allocation20 + $0x8] sm:$0xff]
    %v936 = vld [vmem:[#allocation20 + $0x10] sm:$0xff]
    %v937 = vld [vmem:[#allocation20 + $0x18] sm:$0xff]
    %v938 = vld [vmem:[#allocation21] sm:$0xff]
    %v939 = vld [vmem:[#allocation21 + $0x8] sm:$0xff]
    %v940 = vld [vmem:[#allocation21 + $0x10] sm:$0xff]
    %v941 = vld [vmem:[#allocation21 + $0x18] sm:$0xff]
    %v942 = vld [vmem:[%s15] sm:$0x1]
    loop: start=0, step=1, limit=8
    $region127: #{tpu_custom_call.1} parent=1 // loop_pre_header
      _
    $region128: #{tpu_custom_call.1} parent=1 // loop_header
      %s944 = sphi 0, %s948
      %p945 = scmp.ge.s32.totalorder %s944, 8
      %v949 = vphi 0.0, %v1229
    $region129: #{tpu_custom_call.1} parent=1 // loop_header_branch
      %947 = sbr.rel (%p945) target = $region133
    $region130: #{tpu_custom_call.1} parent=1 // loop_body
      %s950 = ssub.s32 7, %s944
      %s951 = smul.u32 %s950, 2
      %s952 = scalar_lea.vmem [#allocation2], %s951
      %v953 = vld [vmem:[%s952] sm:$0x3]
      %s954 = scalar_lea.vmem [#allocation3], %s951
      %v955 = vld [vmem:[%s954] sm:$0x3]
      %vm956 = vcmask 261120
      %v958 = vsel %vm956, %v955, 0
      %960 = vmatprep.subr.mxu0 0.0
      %961 = vmatpush1.msra.mxu0 %v934
      %962 = vmatprep.subr.mxu0 0.0
      %963 = vmatpush1.msra.mxu0 %v935
      %964 = vmatprep.subr.mxu0 0.0
      %965 = vmatpush1.msra.mxu0 %v936
      %966 = vmatprep.subr.mxu0 0.0
      %967 = vmatpush1.msra.mxu0 %v937
      %968 = vmatprep.subr.mxu0 0.0
      %969 = vmatpush1.msra.mxu0 0.0
      %970 = vmatprep.subr.mxu0 0.0
      %971 = vmatpush1.msra.mxu0 0.0
      %972 = vmatprep.subr.mxu0 0.0
      %973 = vmatpush1.msra.mxu0 0.0
      %974 = vmatprep.subr.mxu0 0.0
      %975 = vmatpush1.msra.mxu0 0.0
      %976 = vmatprep.subr.mxu0 0.0
      %977 = vmatpush1.msra.mxu0 0.0
      %978 = vmatprep.subr.mxu0 0.0
      %979 = vmatpush1.msra.mxu0 0.0
      %980 = vmatprep.subr.mxu0 0.0
      %981 = vmatpush1.msra.mxu0 0.0
      %982 = vmatprep.subr.mxu0 0.0
      %983 = vmatpush1.msra.mxu0 0.0
      %984 = vmatprep.subr.mxu0 0.0
      %985 = vmatpush1.msra.mxu0 0.0
      %986 = vmatprep.subr.mxu0 0.0
      %987 = vmatpush1.msra.mxu0 0.0
      %988 = vmatprep.subr.mxu0 0.0
      %989 = vmatpush1.msra.mxu0 0.0
      %990 = vmatprep.subr.mxu0 0.0
      %991 = vmatpush1.msra.mxu0 0.0
      %992 = vmatprep.subr.mxu0 0.0
      %993 = vmatpush1.msra.mxu0 0.0
      %994 = vmatprep.subr.mxu0 0.0
      %995 = vmatpush1.msra.mxu0 0.0
      %996 = vmatprep.subr.mxu0 0.0
      %997 = vmatpush1.msra.mxu0 0.0
      %998 = vmatprep.subr.mxu0 0.0
      %999 = vmatpush1.msra.mxu0 0.0
      %1000 = vmatprep.subr.mxu0 0.0
      %1001 = vmatpush1.msra.mxu0 0.0
      %1002 = vmatprep.subr.mxu0 0.0
      %1003 = vmatpush1.msra.mxu0 0.0
      %1004 = vmatprep.subr.mxu0 0.0
      %1005 = vmatpush1.msra.mxu0 0.0
      %1006 = vmatprep.subr.mxu0 0.0
      %1007 = vmatpush1.msra.mxu0 0.0
      %1008 = vmatprep.subr.mxu0 0.0
      %1009 = vmatpush1.msra.mxu0 0.0
      %1010 = vmatprep.subr.mxu0 0.0
      %1011 = vmatpush1.msra.mxu0 0.0
      %1012 = vmatprep.subr.mxu0 0.0
      %1013 = vmatpush1.msra.mxu0 0.0
      %1014 = vmatprep.subr.mxu0 0.0
      %1015 = vmatpush1.msra.mxu0 0.0
      %1016 = vmatprep.subr.mxu0 0.0
      %1017 = vmatpush1.msra.mxu0 0.0
      %1018 = vmatprep.subr.mxu0 0.0
      %1019 = vmatpush1.msra.mxu0 0.0
      %1020 = vmatprep.subr.mxu0 0.0
      %1021 = vmatpush1.msra.mxu0 0.0
      %1022 = vmatprep.subr.mxu0 0.0
      %1023 = vmatpush1.msra.mxu0 0.0
      %1024 = vmatprep.mubr.f32.mxu0 0.0
      %1025 = vmatmul.mubr.f32.gmra.mrb[0].mxu0 %v958
      %v1026 = vpop.f32.mrb[0].mxu0
      %v1027 = vadd.f32 0.0, %v1026
      %v1028 = vpop.f32.mrb[0].mxu0
      %1029 = vdwg.mxu0
      %v1031 = vsel %vm956, %v953, 0
      %1033 = vmatprep.subr.mxu0 0.0
      %1034 = vmatpush1.msra.mxu0 %v930
      %1035 = vmatprep.subr.mxu0 0.0
      %1036 = vmatpush1.msra.mxu0 %v931
      %1037 = vmatprep.subr.mxu0 0.0
      %1038 = vmatpush1.msra.mxu0 %v932
      %1039 = vmatprep.subr.mxu0 0.0
      %1040 = vmatpush1.msra.mxu0 %v933
      %1041 = vmatprep.subr.mxu0 0.0
      %1042 = vmatpush1.msra.mxu0 0.0
      %1043 = vmatprep.subr.mxu0 0.0
      %1044 = vmatpush1.msra.mxu0 0.0
      %1045 = vmatprep.subr.mxu0 0.0
      %1046 = vmatpush1.msra.mxu0 0.0
      %1047 = vmatprep.subr.mxu0 0.0
      %1048 = vmatpush1.msra.mxu0 0.0
      %1049 = vmatprep.subr.mxu0 0.0
      %1050 = vmatpush1.msra.mxu0 0.0
      %1051 = vmatprep.subr.mxu0 0.0
      %1052 = vmatpush1.msra.mxu0 0.0
      %1053 = vmatprep.subr.mxu0 0.0
      %1054 = vmatpush1.msra.mxu0 0.0
      %1055 = vmatprep.subr.mxu0 0.0
      %1056 = vmatpush1.msra.mxu0 0.0
      %1057 = vmatprep.subr.mxu0 0.0
      %1058 = vmatpush1.msra.mxu0 0.0
      %1059 = vmatprep.subr.mxu0 0.0
      %1060 = vmatpush1.msra.mxu0 0.0
      %1061 = vmatprep.subr.mxu0 0.0
      %1062 = vmatpush1.msra.mxu0 0.0
      %1063 = vmatprep.subr.mxu0 0.0
      %1064 = vmatpush1.msra.mxu0 0.0
      %1065 = vmatprep.subr.mxu0 0.0
      %1066 = vmatpush1.msra.mxu0 0.0
      %1067 = vmatprep.subr.mxu0 0.0
      %1068 = vmatpush1.msra.mxu0 0.0
      %1069 = vmatprep.subr.mxu0 0.0
      %1070 = vmatpush1.msra.mxu0 0.0
      %1071 = vmatprep.subr.mxu0 0.0
      %1072 = vmatpush1.msra.mxu0 0.0
      %1073 = vmatprep.subr.mxu0 0.0
      %1074 = vmatpush1.msra.mxu0 0.0
      %1075 = vmatprep.subr.mxu0 0.0
      %1076 = vmatpush1.msra.mxu0 0.0
      %1077 = vmatprep.subr.mxu0 0.0
      %1078 = vmatpush1.msra.mxu0 0.0
      %1079 = vmatprep.subr.mxu0 0.0
      %1080 = vmatpush1.msra.mxu0 0.0
      %1081 = vmatprep.subr.mxu0 0.0
      %1082 = vmatpush1.msra.mxu0 0.0
      %1083 = vmatprep.subr.mxu0 0.0
      %1084 = vmatpush1.msra.mxu0 0.0
      %1085 = vmatprep.subr.mxu0 0.0
      %1086 = vmatpush1.msra.mxu0 0.0
      %1087 = vmatprep.subr.mxu0 0.0
      %1088 = vmatpush1.msra.mxu0 0.0
      %1089 = vmatprep.subr.mxu0 0.0
      %1090 = vmatpush1.msra.mxu0 0.0
      %1091 = vmatprep.subr.mxu0 0.0
      %1092 = vmatpush1.msra.mxu0 0.0
      %1093 = vmatprep.subr.mxu0 0.0
      %1094 = vmatpush1.msra.mxu0 0.0
      %1095 = vmatprep.subr.mxu0 0.0
      %1096 = vmatpush1.msra.mxu0 0.0
      %1097 = vmatprep.mubr.f32.mxu0 0.0
      %1098 = vmatmul.mubr.f32.gmra.mrb[0].mxu0 %v1031
      %v1099 = vpop.f32.mrb[0].mxu0
      %v1100 = vadd.f32 %v1027, %v1099
      %v1101 = vpop.f32.mrb[0].mxu0
      %1102 = vdwg.mxu0
      %1104 = vrot.lane.b32.xlu0 %v949, 64
      %v1105 = vpop.permute.xlu0 %1104
      %v1106 = vsel %vm956, %v1105, 0
      %1108 = vmatprep.subr.mxu0 0.0
      %1109 = vmatpush1.msra.mxu0 %v938
      %1110 = vmatprep.subr.mxu0 0.0
      %1111 = vmatpush1.msra.mxu0 %v939
      %1112 = vmatprep.subr.mxu0 0.0
      %1113 = vmatpush1.msra.mxu0 %v940
      %1114 = vmatprep.subr.mxu0 0.0
      %1115 = vmatpush1.msra.mxu0 %v941
      %1116 = vmatprep.subr.mxu0 0.0
      %1117 = vmatpush1.msra.mxu0 0.0
      %1118 = vmatprep.subr.mxu0 0.0
      %1119 = vmatpush1.msra.mxu0 0.0
      %1120 = vmatprep.subr.mxu0 0.0
      %1121 = vmatpush1.msra.mxu0 0.0
      %1122 = vmatprep.subr.mxu0 0.0
      %1123 = vmatpush1.msra.mxu0 0.0
      %1124 = vmatprep.subr.mxu0 0.0
      %1125 = vmatpush1.msra.mxu0 0.0
      %1126 = vmatprep.subr.mxu0 0.0
      %1127 = vmatpush1.msra.mxu0 0.0
      %1128 = vmatprep.subr.mxu0 0.0
      %1129 = vmatpush1.msra.mxu0 0.0
      %1130 = vmatprep.subr.mxu0 0.0
      %1131 = vmatpush1.msra.mxu0 0.0
      %1132 = vmatprep.subr.mxu0 0.0
      %1133 = vmatpush1.msra.mxu0 0.0
      %1134 = vmatprep.subr.mxu0 0.0
      %1135 = vmatpush1.msra.mxu0 0.0
      %1136 = vmatprep.subr.mxu0 0.0
      %1137 = vmatpush1.msra.mxu0 0.0
      %1138 = vmatprep.subr.mxu0 0.0
      %1139 = vmatpush1.msra.mxu0 0.0
      %1140 = vmatprep.subr.mxu0 0.0
      %1141 = vmatpush1.msra.mxu0 0.0
      %1142 = vmatprep.subr.mxu0 0.0
      %1143 = vmatpush1.msra.mxu0 0.0
      %1144 = vmatprep.subr.mxu0 0.0
      %1145 = vmatpush1.msra.mxu0 0.0
      %1146 = vmatprep.subr.mxu0 0.0
      %1147 = vmatpush1.msra.mxu0 0.0
      %1148 = vmatprep.subr.mxu0 0.0
      %1149 = vmatpush1.msra.mxu0 0.0
      %1150 = vmatprep.subr.mxu0 0.0
      %1151 = vmatpush1.msra.mxu0 0.0
      %1152 = vmatprep.subr.mxu0 0.0
      %1153 = vmatpush1.msra.mxu0 0.0
      %1154 = vmatprep.subr.mxu0 0.0
      %1155 = vmatpush1.msra.mxu0 0.0
      %1156 = vmatprep.subr.mxu0 0.0
      %1157 = vmatpush1.msra.mxu0 0.0
      %1158 = vmatprep.subr.mxu0 0.0
      %1159 = vmatpush1.msra.mxu0 0.0
      %1160 = vmatprep.subr.mxu0 0.0
      %1161 = vmatpush1.msra.mxu0 0.0
      %1162 = vmatprep.subr.mxu0 0.0
      %1163 = vmatpush1.msra.mxu0 0.0
      %1164 = vmatprep.subr.mxu0 0.0
      %1165 = vmatpush1.msra.mxu0 0.0
      %1166 = vmatprep.subr.mxu0 0.0
      %1167 = vmatpush1.msra.mxu0 0.0
      %1168 = vmatprep.subr.mxu0 0.0
      %1169 = vmatpush1.msra.mxu0 0.0
      %1170 = vmatprep.subr.mxu0 0.0
      %1171 = vmatpush1.msra.mxu0 0.0
      %1172 = vmatprep.mubr.f32.mxu0 0.0
      %1173 = vmatmul.mubr.f32.gmra.mrb[0].mxu0 %v1106
      %v1174 = vpop.f32.mrb[0].mxu0
      %v1175 = vadd.f32 0.0, %v1174
      %v1176 = vpop.f32.mrb[0].mxu0
      %1177 = vdwg.mxu0
      %v1178 = vadd.f32 %v1100, %v1175
      %v1180 = vlaneseq
      %v1181 = vshrl.u32 %v1180, 7
      %v1182 = vsub.s32 0, %v1181
      %v1183 = vrot.slane %v942, %v1182
      %v1185 = vadd.f32 %v1178, %v1183
      %v1186 = vxor.u32 %v1185, 2147483648
      %v1187 = vmul.f32 %v1186, 1.442695
      %v1188 = vpow.pop %v1187
      %v1189 = vadd.f32 %v1188, 1.0
      %v1190 = vrcp.pop %v1189
      %v1191 = vmul.f32 1.0, %v1190
      %1193 = vrot.lane.b32.xlu0 %v1185, 32
      %v1194 = vpop.permute.xlu0 %1193
      %v1196 = vmul.f32 %v1191, %v1194
      %1198 = vrot.lane.b32.xlu0 %v1196, 64
      %v1199 = vpop.permute.xlu0 %1198
      %v1201 = vadd.f32 %v1185, %v1199
      %v1202 = vtanh.pop %v1201
      %v1203 = vsub.f32 %v949, %v1202
      %1205 = vrot.lane.b32.xlu0 %v1203, 96
      %v1206 = vpop.permute.xlu0 %1205
      %v1208 = vmul.f32 %v1191, %v1206
      %1210 = vrot.lane.b32.xlu0 %v1208, 32
      %v1211 = vpop.permute.xlu0 %1210
      %v1213 = vadd.f32 %v1202, %v1211
      %v1214 = vstv %s950
      %vm1215 = vcmp.lt.s32.totalorder %v1214, %v193
      %v1216 = vsel %vm1215, 1, 0
      %1217 = vset.pattern.permute.xlu0 0
      %1218 = vperm.xlu0 %1217, %v1216
      %v1219 = vpop.permute.xlu0 %1218
      %vm1220 = vcmp.eq.s32.totalorder %v1219, 1
      %v1221 = vsel %vm1220, %v1213, 0.0
      %1223 = vrot.lane.b32.xlu0 %v1221, 64
      %v1224 = vpop.permute.xlu0 %1223
      %s1226 = scalar_lea.vmem [#allocation24], %s951
      %vm1227 = vcmask 254976
      %1228 = vst.msk [vmem:[%s1226] sm:$0x3] %vm1227, %v1224
      %v1229 = vsel %vm1220, %v1213, %v949
    $region131: #{tpu_custom_call.1} parent=1 // loop_footer
      %s948 = sadd.s32 1, %s944
    $region132: #{tpu_custom_call.1} parent=1 // loop_footer_branch
      %943 = sbr.rel target = $region128
    $region133: #{tpu_custom_call.1} parent=1 // loop_exit
      _
    // Predicated region
    $region134: #{tpu_custom_call.1} parent=1 // pred_check
      _
    $region135: #{tpu_custom_call.1} parent=1 // pred_check_branch
      %1231 = sbr.rel (0) target = $region137
    $region136: #{tpu_custom_call.1} parent=1 // pred_region
      %s1233 = ssub.s32 256, 256
      %1234 = vsyncadd [#allocation8], %s1233
      %s1235 = sshll.u32 [#allocation23], 4
      %s1236 = int_to_ptr.vmem [resolvable:$true] %s1235
      %1241 = dma.vmem_to_hbm [thread:$0]  %s1236, 256, %s16, [#allocation8], 32, 32, 2
    $region137: #{tpu_custom_call.1} parent=1 // pred_fallthru
      _
    // Predicated region
    $region138: #{tpu_custom_call.1} parent=1 // pred_check
      _
    $region139: #{tpu_custom_call.1} parent=1 // pred_check_branch
      %1243 = sbr.rel (0) target = $region141
    $region140: #{tpu_custom_call.1} parent=1 // pred_region
      %s1245 = ssub.s32 256, 256
      %1246 = vsyncadd [#allocation25], %s1245
      %s1247 = sshll.u32 [#allocation24], 4
      %s1248 = int_to_ptr.vmem [resolvable:$true] %s1247
      %1253 = dma.vmem_to_hbm [thread:$0]  %s1248, 256, %s17, [#allocation25], 32, 32, 2
    $region141: #{tpu_custom_call.1} parent=1 // pred_fallthru
      _
    // Predicated region
    $region142: #{tpu_custom_call.1} parent=1 // pred_check
      _
    $region143: #{tpu_custom_call.1} parent=1 // pred_check_branch
      %1255 = sbr.rel (0) target = $region145
    $region144: #{tpu_custom_call.1} parent=1 // pred_region
      %1256 = dma.done [#allocation8], 256
    $region145: #{tpu_custom_call.1} parent=1 // pred_fallthru
      _
    // Predicated region
    $region146: #{tpu_custom_call.1} parent=1 // pred_check
      _
    $region147: #{tpu_custom_call.1} parent=1 // pred_check_branch
      %1258 = sbr.rel (0) target = $region149
    $region148: #{tpu_custom_call.1} parent=1 // pred_region
      %1259 = dma.done [#allocation25], 256
    $region149: #{tpu_custom_call.1} parent=1 // pred_fallthru
      _
    %1260 = vsyncpa [#allocation7], 1
    %1261 = vsyncpa [#allocation10], 1
    %1262 = vsyncpa [#allocation13], 1
    %1263 = vsyncpa [#allocation16], 1
    %1264 = vsyncpa [#allocation19], 1
    %1265 = vsyncpa [#allocation22], 1
    %1266 = vsyncpa [#allocation8], 1
    %1267 = vsyncpa [#allocation25], 1

</llo_original>
